<compile_context>
chip_gen: v7x
topology: tpu7x:2x2x1
jax: 0.10.0
libtpu: 0.0.40
codegen_flags: <defaults>
</compile_context>

<pallas_src>
import functools

import jax
import jax.numpy as jnp
from jax.experimental import pallas as pl
from jax.experimental.pallas import tpu as pltpu


def _encoder_kernel(x_ref, w_ih_ref, w_hh_ref, w_lin_ref, b_g_ref, b_lin_ref,
                    out_ref, h_ref, *, chunk):
    """One grid step = one chunk of `chunk` timesteps.

    x_ref    : (T, B, I)   bf16   chunk of inputs
    w_ih_ref : (3, I, H)   bf16   per-gate input weights (already transposed)
    w_hh_ref : (3, H, H)   bf16   per-gate hidden weights (already transposed)
    w_lin_ref: (H, O)      bf16   output projection (already transposed)
    b_g_ref  : (4, H)      f32    rows: [b_r, b_z, b_in, b_hn] (r/z pre-folded)
    b_lin_ref: (1, O)      f32
    out_ref  : (T, B, O)   f32
    h_ref    : (B, H)      f32    persistent hidden state (VMEM scratch)
    """
    T = chunk
    c = pl.program_id(0)

    # PyTorch default h0 = 0; scratch persists across chunks afterwards.
    @pl.when(c == 0)
    def _():
        h_ref[...] = jnp.zeros_like(h_ref)

    _, B, I = x_ref.shape
    x = x_ref[...].reshape(T * B, I)                     # bf16 (T*B, I)

    b_r = b_g_ref[0:1]                                   # (1, H) f32
    b_z = b_g_ref[1:2]
    b_in = b_g_ref[2:3]
    b_hn = b_g_ref[3:4]

    # Hoisted input->gates matmuls for the whole chunk (M = T*B on the MXU).
    gi_r = jnp.dot(x, w_ih_ref[0], preferred_element_type=jnp.float32) + b_r
    gi_z = jnp.dot(x, w_ih_ref[1], preferred_element_type=jnp.float32) + b_z
    gi_n = jnp.dot(x, w_ih_ref[2], preferred_element_type=jnp.float32) + b_in

    # Hoist weight loads out of the recurrence.
    w_hr = w_hh_ref[0]
    w_hz = w_hh_ref[1]
    w_hn = w_hh_ref[2]

    # Serial recurrence over the chunk.  `chunk` is a small static int, so a
    # Python for-loop is a fully unrolled loop with static indexing
    # (equivalent to lax.fori_loop(..., unroll=True)).
    h = h_ref[...]                                       # (B, H) f32 carry
    hs = []
    for t in range(T):
        hb = h.astype(jnp.bfloat16)
        gh_r = jnp.dot(hb, w_hr, preferred_element_type=jnp.float32)
        gh_z = jnp.dot(hb, w_hz, preferred_element_type=jnp.float32)
        gh_n = jnp.dot(hb, w_hn, preferred_element_type=jnp.float32) + b_hn
        lo, hi = t * B, (t + 1) * B
        r = jax.nn.sigmoid(gi_r[lo:hi] + gh_r)
        z = jax.nn.sigmoid(gi_z[lo:hi] + gh_z)
        n = jnp.tanh(gi_n[lo:hi] + r * gh_n)
        h = n + z * (h - n)                              # (1-z)*n + z*h
        hs.append(h)
    h_ref[...] = h

    # Batched output projection for the whole chunk, single slab store.
    hs_all = jnp.concatenate(hs, axis=0).astype(jnp.bfloat16)   # (T*B, H)
    y = jnp.dot(hs_all, w_lin_ref[...],
                preferred_element_type=jnp.float32) + b_lin_ref[...]
    out_ref[...] = y.reshape(T, B, -1).astype(out_ref.dtype)


def encoder_forward(inp, params, *, chunk=8):
    """inp: (S, B, I) float32.  params: dict of GRU + Linear weights."""
    S, B, I = inp.shape
    H = params["w_hh"].shape[0] // 3
    O = params["w_lin"].shape[0]

    T = min(chunk, S)
    n_chunks = pl.cdiv(S, T)
    S_pad = n_chunks * T

    x = inp.astype(jnp.bfloat16)                         # bf16 MXU operand
    if S_pad != S:
        x = jnp.concatenate(
            [x, jnp.zeros((S_pad - S, B, I), x.dtype)], axis=0)

    # Per-gate, pre-transposed, bf16 weights.  PyTorch gate order is [r, z, n].
    w_ih_g = jnp.transpose(params["w_ih"].reshape(3, H, I),
                           (0, 2, 1)).astype(jnp.bfloat16)      # (3, I, H)
    w_hh_g = jnp.transpose(params["w_hh"].reshape(3, H, H),
                           (0, 2, 1)).astype(jnp.bfloat16)      # (3, H, H)
    w_lin_t = params["w_lin"].T.astype(jnp.bfloat16)            # (H, O)

    # Fold biases: r and z always see b_ih + b_hh; n keeps them separate
    # (b_hn is gated by r inside the recurrence).
    b_ih = params["b_ih"].reshape(3, H)
    b_hh = params["b_hh"].reshape(3, H)
    b_gates = jnp.stack(
        [b_ih[0] + b_hh[0],        # b_r
         b_ih[1] + b_hh[1],        # b_z
         b_ih[2],                  # b_in
         b_hh[2]],                 # b_hn
        axis=0).astype(jnp.float32)                             # (4, H)
    b_lin = params["b_lin"].reshape(1, O).astype(jnp.float32)

    kernel = functools.partial(_encoder_kernel, chunk=T)

    out = pl.pallas_call(
        kernel,
        out_shape=jax.ShapeDtypeStruct((S_pad, B, O), jnp.float32),
        grid_spec=pltpu.PrefetchScalarGridSpec(
            num_scalar_prefetch=0,
            grid=(n_chunks,),
            in_specs=[
                pl.BlockSpec((T, B, I), lambda c: (c, 0, 0)),    # x chunk
                pl.BlockSpec((3, I, H), lambda c: (0, 0, 0)),    # W_ih per gate
                pl.BlockSpec((3, H, H), lambda c: (0, 0, 0)),    # W_hh per gate
                pl.BlockSpec((H, O), lambda c: (0, 0)),          # W_lin^T
                pl.BlockSpec((4, H), lambda c: (0, 0)),          # folded biases
                pl.BlockSpec((1, O), lambda c: (0, 0)),          # b_lin
            ],
            out_specs=pl.BlockSpec((T, B, O), lambda c: (c, 0, 0)),
            scratch_shapes=[pltpu.VMEM((B, H), jnp.float32)],    # hidden state
        ),
        compiler_params=pltpu.CompilerParams(
            dimension_semantics=("arbitrary",),   # sequential recurrence
        ),
    )(x, w_ih_g, w_hh_g, w_lin_t, b_gates, b_lin)

    return out[:S]


def init_params(key, input_size, hidden_size, output_size):
    """Deterministic init mimicking PyTorch's U(-1/sqrt(H), 1/sqrt(H))."""
    ks = jax.random.split(key, 7)
    kgru = 1.0 / jnp.sqrt(hidden_size)
    klin = 1.0 / jnp.sqrt(hidden_size)
    u = lambda k, shape, a: jax.random.uniform(k, shape, jnp.float32, -a, a)
    return {
        "w_ih": u(ks[0], (3 * hidden_size, input_size), kgru),
        "w_hh": u(ks[1], (3 * hidden_size, hidden_size), kgru),
        "b_ih": u(ks[2], (3 * hidden_size,), kgru),
        "b_hh": u(ks[3], (3 * hidden_size,), kgru),
        "w_lin": u(ks[4], (output_size, hidden_size), klin),
        "b_lin": u(ks[5], (output_size,), klin),
    }


def encoder_reference(inp, params):
    """Pure-JAX f32 reference matching PyTorch nn.GRU + nn.Linear semantics."""
    S, B, I = inp.shape
    H = params["w_hh"].shape[0] // 3
    w_ih, w_hh = params["w_ih"], params["w_hh"]
    b_ih, b_hh = params["b_ih"], params["b_hh"]

    def step(h, x):
        gi = x @ w_ih.T + b_ih
        gh = h @ w_hh.T + b_hh
        r = jax.nn.sigmoid(gi[:, :H] + gh[:, :H])
        z = jax.nn.sigmoid(gi[:, H:2 * H] + gh[:, H:2 * H])
        n = jnp.tanh(gi[:, 2 * H:] + r * gh[:, 2 * H:])
        h_new = (1.0 - z) * n + z * h
        return h_new, h_new

    h0 = jnp.zeros((B, H), jnp.float32)
    _, hs = jax.lax.scan(step, h0, inp)          # (S, B, H)
    return hs @ params["w_lin"].T + params["b_lin"]


if __name__ == "__main__":
    seq_len, batch, input_size, hidden_size, output_size = 8, 2, 16, 32, 16

    key = jax.random.PRNGKey(0)
    k_in, k_par = jax.random.split(key)
    inp = jax.random.normal(k_in, (seq_len, batch, input_size), jnp.float32)
    params = init_params(k_par, input_size, hidden_size, output_size)

    out = encoder_forward(inp, params)
    out = jax.block_until_ready(out)

    ref = encoder_reference(inp, params)
    assert out.shape == (seq_len, batch, output_size)
    # bf16 MXU operands (f32 accumulation / f32 hidden-state carry) => relaxed
    # tolerance vs. the pure-f32 reference.
    assert jnp.allclose(out, ref, atol=5e-2, rtol=5e-2), "mismatch vs reference"

    print("KERNEL_OK")
</pallas_src>

<mosaic_0001>
module attributes {stable_mosaic.version = 11 : i64} {
  func.func @_encoder_kernel(%arg0: i32, %arg1: memref<8x2x16xbf16, #tpu.memory_space<vmem>>, %arg2: memref<3x16x32xbf16, #tpu.memory_space<vmem>>, %arg3: memref<3x32x32xbf16, #tpu.memory_space<vmem>>, %arg4: memref<32x16xbf16, #tpu.memory_space<vmem>>, %arg5: memref<4x32xf32, #tpu.memory_space<vmem>>, %arg6: memref<1x16xf32, #tpu.memory_space<vmem>>, %arg7: memref<8x2x16xf32, #tpu.memory_space<vmem>>, %arg8: memref<2x32xf32, #tpu.memory_space<vmem>>) attributes {dimension_semantics = [#tpu.dimension_semantics<arbitrary>], iteration_bounds = array<i64: 1>, scalar_prefetch = 0 : i64, scratch_operands = 1 : i64, tpu.core_type = #tpu.core_type<tc>, window_params = [{transform_indices = @transform_0, window_bounds = array<i64: 8, 2, 16>}, {pipeline_mode = #tpu.pipeline_mode<synchronous>, transform_indices = @transform_1, window_bounds = array<i64: 3, 16, 32>}, {pipeline_mode = #tpu.pipeline_mode<synchronous>, transform_indices = @transform_2, window_bounds = array<i64: 3, 32, 32>}, {pipeline_mode = #tpu.pipeline_mode<synchronous>, transform_indices = @transform_3, window_bounds = array<i64: 32, 16>}, {pipeline_mode = #tpu.pipeline_mode<synchronous>, transform_indices = @transform_4, window_bounds = array<i64: 4, 32>}, {pipeline_mode = #tpu.pipeline_mode<synchronous>, transform_indices = @transform_5, window_bounds = array<i64: 1, 16>}, {transform_indices = @transform_6, window_bounds = array<i64: 8, 2, 16>}]} {
    %c0_i32 = arith.constant 0 : i32
    %0 = arith.cmpi eq, %arg0, %c0_i32 : i32
    %1 = arith.extui %0 : i1 to i32
    %c0_i32_0 = arith.constant 0 : i32
    %2 = arith.cmpi ne, %1, %c0_i32_0 : i32
    scf.if %2 {
      %cst_80 = arith.constant 0.000000e+00 : f32
      %257 = vector.broadcast %cst_80 : f32 to vector<2x32xf32>
      %c0_81 = arith.constant 0 : index
      %c0_82 = arith.constant 0 : index
      %258 = vector.load %arg8[%c0_81, %c0_82] : memref<2x32xf32, #tpu.memory_space<vmem>>, vector<2x32xf32>
      tpu.vector_store %arg8[%c0_81, %c0_82], %257 {strides = array<i32>} : memref<2x32xf32, #tpu.memory_space<vmem>>, vector<2x32xf32>,
    } else {
    }
    %c0 = arith.constant 0 : index
    %c0_1 = arith.constant 0 : index
    %c0_2 = arith.constant 0 : index
    %3 = vector.load %arg1[%c0, %c0_1, %c0_2] : memref<8x2x16xbf16, #tpu.memory_space<vmem>>, vector<8x2x16xbf16>
    %4 = vector.shape_cast %3 : vector<8x2x16xbf16> to vector<16x16xbf16>
    %c0_3 = arith.constant 0 : index
    %c0_4 = arith.constant 0 : index
    %5 = vector.load %arg5[%c0_3, %c0_4] : memref<4x32xf32, #tpu.memory_space<vmem>>, vector<1x32xf32>
    %c1 = arith.constant 1 : index
    %c0_5 = arith.constant 0 : index
    %6 = vector.load %arg5[%c1, %c0_5] : memref<4x32xf32, #tpu.memory_space<vmem>>, vector<1x32xf32>
    %c2 = arith.constant 2 : index
    %c0_6 = arith.constant 0 : index
    %7 = vector.load %arg5[%c2, %c0_6] : memref<4x32xf32, #tpu.memory_space<vmem>>, vector<1x32xf32>
    %c3 = arith.constant 3 : index
    %c0_7 = arith.constant 0 : index
    %8 = vector.load %arg5[%c3, %c0_7] : memref<4x32xf32, #tpu.memory_space<vmem>>, vector<1x32xf32>
    %c0_8 = arith.constant 0 : index
    %c0_9 = arith.constant 0 : index
    %c0_10 = arith.constant 0 : index
    %9 = vector.load %arg2[%c0_8, %c0_9, %c0_10] : memref<3x16x32xbf16, #tpu.memory_space<vmem>>, vector<1x16x32xbf16>
    %10 = vector.shape_cast %9 : vector<1x16x32xbf16> to vector<16x32xbf16>
    %cst = arith.constant dense<0.000000e+00> : vector<16x32xf32>
    %11 = tpu.matmul %4, %10, %cst {dimension_numbers = #tpu.dot_dimension_numbers<[1], [0], [0], [1], [0, 0, 1, 1], [], []>} : vector<16x16xbf16>, vector<16x32xbf16>, vector<16x32xf32> -> vector<16x32xf32>
    %12 = vector.broadcast %5 : vector<1x32xf32> to vector<16x32xf32>
    %13 = arith.addf %11, %12 : vector<16x32xf32>
    %c1_11 = arith.constant 1 : index
    %c0_12 = arith.constant 0 : index
    %c0_13 = arith.constant 0 : index
    %14 = vector.load %arg2[%c1_11, %c0_12, %c0_13] : memref<3x16x32xbf16, #tpu.memory_space<vmem>>, vector<1x16x32xbf16>
    %15 = vector.shape_cast %14 : vector<1x16x32xbf16> to vector<16x32xbf16>
    %cst_14 = arith.constant dense<0.000000e+00> : vector<16x32xf32>
    %16 = tpu.matmul %4, %15, %cst_14 {dimension_numbers = #tpu.dot_dimension_numbers<[1], [0], [0], [1], [0, 0, 1, 1], [], []>} : vector<16x16xbf16>, vector<16x32xbf16>, vector<16x32xf32> -> vector<16x32xf32>
    %17 = vector.broadcast %6 : vector<1x32xf32> to vector<16x32xf32>
    %18 = arith.addf %16, %17 : vector<16x32xf32>
    %c2_15 = arith.constant 2 : index
    %c0_16 = arith.constant 0 : index
    %c0_17 = arith.constant 0 : index
    %19 = vector.load %arg2[%c2_15, %c0_16, %c0_17] : memref<3x16x32xbf16, #tpu.memory_space<vmem>>, vector<1x16x32xbf16>
    %20 = vector.shape_cast %19 : vector<1x16x32xbf16> to vector<16x32xbf16>
    %cst_18 = arith.constant dense<0.000000e+00> : vector<16x32xf32>
    %21 = tpu.matmul %4, %20, %cst_18 {dimension_numbers = #tpu.dot_dimension_numbers<[1], [0], [0], [1], [0, 0, 1, 1], [], []>} : vector<16x16xbf16>, vector<16x32xbf16>, vector<16x32xf32> -> vector<16x32xf32>
    %22 = vector.broadcast %7 : vector<1x32xf32> to vector<16x32xf32>
    %23 = arith.addf %21, %22 : vector<16x32xf32>
    %c0_19 = arith.constant 0 : index
    %c0_20 = arith.constant 0 : index
    %c0_21 = arith.constant 0 : index
    %24 = vector.load %arg3[%c0_19, %c0_20, %c0_21] : memref<3x32x32xbf16, #tpu.memory_space<vmem>>, vector<1x32x32xbf16>
    %25 = vector.shape_cast %24 : vector<1x32x32xbf16> to vector<32x32xbf16>
    %c1_22 = arith.constant 1 : index
    %c0_23 = arith.constant 0 : index
    %c0_24 = arith.constant 0 : index
    %26 = vector.load %arg3[%c1_22, %c0_23, %c0_24] : memref<3x32x32xbf16, #tpu.memory_space<vmem>>, vector<1x32x32xbf16>
    %27 = vector.shape_cast %26 : vector<1x32x32xbf16> to vector<32x32xbf16>
    %c2_25 = arith.constant 2 : index
    %c0_26 = arith.constant 0 : index
    %c0_27 = arith.constant 0 : index
    %28 = vector.load %arg3[%c2_25, %c0_26, %c0_27] : memref<3x32x32xbf16, #tpu.memory_space<vmem>>, vector<1x32x32xbf16>
    %29 = vector.shape_cast %28 : vector<1x32x32xbf16> to vector<32x32xbf16>
    %c0_28 = arith.constant 0 : index
    %c0_29 = arith.constant 0 : index
    %30 = vector.load %arg8[%c0_28, %c0_29] : memref<2x32xf32, #tpu.memory_space<vmem>>, vector<2x32xf32>
    %31 = arith.truncf %30 : vector<2x32xf32> to vector<2x32xbf16>
    %cst_30 = arith.constant dense<0.000000e+00> : vector<2x32xf32>
    %32 = tpu.matmul %31, %25, %cst_30 {dimension_numbers = #tpu.dot_dimension_numbers<[1], [0], [0], [1], [0, 0, 1, 1], [], []>} : vector<2x32xbf16>, vector<32x32xbf16>, vector<2x32xf32> -> vector<2x32xf32>
    %cst_31 = arith.constant dense<0.000000e+00> : vector<2x32xf32>
    %33 = tpu.matmul %31, %27, %cst_31 {dimension_numbers = #tpu.dot_dimension_numbers<[1], [0], [0], [1], [0, 0, 1, 1], [], []>} : vector<2x32xbf16>, vector<32x32xbf16>, vector<2x32xf32> -> vector<2x32xf32>
    %cst_32 = arith.constant dense<0.000000e+00> : vector<2x32xf32>
    %34 = tpu.matmul %31, %29, %cst_32 {dimension_numbers = #tpu.dot_dimension_numbers<[1], [0], [0], [1], [0, 0, 1, 1], [], []>} : vector<2x32xbf16>, vector<32x32xbf16>, vector<2x32xf32> -> vector<2x32xf32>
    %35 = vector.broadcast %8 : vector<1x32xf32> to vector<2x32xf32>
    %36 = arith.addf %34, %35 : vector<2x32xf32>
    %37 = vector.extract_strided_slice %13 {offsets = [0, 0], sizes = [2, 32], strides = [1, 1]} : vector<16x32xf32> to vector<2x32xf32>
    %38 = arith.addf %37, %32 : vector<2x32xf32>
    %39 = arith.negf %38 : vector<2x32xf32>
    %40 = math.exp %39 : vector<2x32xf32>
    %cst_33 = arith.constant 1.000000e+00 : f32
    %41 = vector.broadcast %cst_33 : f32 to vector<2x32xf32>
    %42 = arith.addf %41, %40 : vector<2x32xf32>
    %43 = arith.divf %41, %42 : vector<2x32xf32>
    %44 = vector.extract_strided_slice %18 {offsets = [0, 0], sizes = [2, 32], strides = [1, 1]} : vector<16x32xf32> to vector<2x32xf32>
    %45 = arith.addf %44, %33 : vector<2x32xf32>
    %46 = arith.negf %45 : vector<2x32xf32>
    %47 = math.exp %46 : vector<2x32xf32>
    %cst_34 = arith.constant 1.000000e+00 : f32
    %48 = vector.broadcast %cst_34 : f32 to vector<2x32xf32>
    %49 = arith.addf %48, %47 : vector<2x32xf32>
    %50 = arith.divf %48, %49 : vector<2x32xf32>
    %51 = vector.extract_strided_slice %23 {offsets = [0, 0], sizes = [2, 32], strides = [1, 1]} : vector<16x32xf32> to vector<2x32xf32>
    %52 = arith.mulf %43, %36 : vector<2x32xf32>
    %53 = arith.addf %51, %52 : vector<2x32xf32>
    %54 = math.tanh %53 : vector<2x32xf32>
    %55 = arith.subf %30, %54 : vector<2x32xf32>
    %56 = arith.mulf %50, %55 : vector<2x32xf32>
    %57 = arith.addf %54, %56 : vector<2x32xf32>
    %58 = arith.truncf %57 : vector<2x32xf32> to vector<2x32xbf16>
    %cst_35 = arith.constant dense<0.000000e+00> : vector<2x32xf32>
    %59 = tpu.matmul %58, %25, %cst_35 {dimension_numbers = #tpu.dot_dimension_numbers<[1], [0], [0], [1], [0, 0, 1, 1], [], []>} : vector<2x32xbf16>, vector<32x32xbf16>, vector<2x32xf32> -> vector<2x32xf32>
    %cst_36 = arith.constant dense<0.000000e+00> : vector<2x32xf32>
    %60 = tpu.matmul %58, %27, %cst_36 {dimension_numbers = #tpu.dot_dimension_numbers<[1], [0], [0], [1], [0, 0, 1, 1], [], []>} : vector<2x32xbf16>, vector<32x32xbf16>, vector<2x32xf32> -> vector<2x32xf32>
    %cst_37 = arith.constant dense<0.000000e+00> : vector<2x32xf32>
    %61 = tpu.matmul %58, %29, %cst_37 {dimension_numbers = #tpu.dot_dimension_numbers<[1], [0], [0], [1], [0, 0, 1, 1], [], []>} : vector<2x32xbf16>, vector<32x32xbf16>, vector<2x32xf32> -> vector<2x32xf32>
    %62 = vector.broadcast %8 : vector<1x32xf32> to vector<2x32xf32>
    %63 = arith.addf %61, %62 : vector<2x32xf32>
    %64 = vector.extract_strided_slice %13 {offsets = [2, 0], sizes = [2, 32], strides = [1, 1]} : vector<16x32xf32> to vector<2x32xf32>
    %65 = arith.addf %64, %59 : vector<2x32xf32>
    %66 = arith.negf %65 : vector<2x32xf32>
    %67 = math.exp %66 : vector<2x32xf32>
    %cst_38 = arith.constant 1.000000e+00 : f32
    %68 = vector.broadcast %cst_38 : f32 to vector<2x32xf32>
    %69 = arith.addf %68, %67 : vector<2x32xf32>
    %70 = arith.divf %68, %69 : vector<2x32xf32>
    %71 = vector.extract_strided_slice %18 {offsets = [2, 0], sizes = [2, 32], strides = [1, 1]} : vector<16x32xf32> to vector<2x32xf32>
    %72 = arith.addf %71, %60 : vector<2x32xf32>
    %73 = arith.negf %72 : vector<2x32xf32>
    %74 = math.exp %73 : vector<2x32xf32>
    %cst_39 = arith.constant 1.000000e+00 : f32
    %75 = vector.broadcast %cst_39 : f32 to vector<2x32xf32>
    %76 = arith.addf %75, %74 : vector<2x32xf32>
    %77 = arith.divf %75, %76 : vector<2x32xf32>
    %78 = vector.extract_strided_slice %23 {offsets = [2, 0], sizes = [2, 32], strides = [1, 1]} : vector<16x32xf32> to vector<2x32xf32>
    %79 = arith.mulf %70, %63 : vector<2x32xf32>
    %80 = arith.addf %78, %79 : vector<2x32xf32>
    %81 = math.tanh %80 : vector<2x32xf32>
    %82 = arith.subf %57, %81 : vector<2x32xf32>
    %83 = arith.mulf %77, %82 : vector<2x32xf32>
    %84 = arith.addf %81, %83 : vector<2x32xf32>
    %85 = arith.truncf %84 : vector<2x32xf32> to vector<2x32xbf16>
    %cst_40 = arith.constant dense<0.000000e+00> : vector<2x32xf32>
    %86 = tpu.matmul %85, %25, %cst_40 {dimension_numbers = #tpu.dot_dimension_numbers<[1], [0], [0], [1], [0, 0, 1, 1], [], []>} : vector<2x32xbf16>, vector<32x32xbf16>, vector<2x32xf32> -> vector<2x32xf32>
    %cst_41 = arith.constant dense<0.000000e+00> : vector<2x32xf32>
    %87 = tpu.matmul %85, %27, %cst_41 {dimension_numbers = #tpu.dot_dimension_numbers<[1], [0], [0], [1], [0, 0, 1, 1], [], []>} : vector<2x32xbf16>, vector<32x32xbf16>, vector<2x32xf32> -> vector<2x32xf32>
    %cst_42 = arith.constant dense<0.000000e+00> : vector<2x32xf32>
    %88 = tpu.matmul %85, %29, %cst_42 {dimension_numbers = #tpu.dot_dimension_numbers<[1], [0], [0], [1], [0, 0, 1, 1], [], []>} : vector<2x32xbf16>, vector<32x32xbf16>, vector<2x32xf32> -> vector<2x32xf32>
    %89 = vector.broadcast %8 : vector<1x32xf32> to vector<2x32xf32>
    %90 = arith.addf %88, %89 : vector<2x32xf32>
    %91 = vector.extract_strided_slice %13 {offsets = [4, 0], sizes = [2, 32], strides = [1, 1]} : vector<16x32xf32> to vector<2x32xf32>
    %92 = arith.addf %91, %86 : vector<2x32xf32>
    %93 = arith.negf %92 : vector<2x32xf32>
    %94 = math.exp %93 : vector<2x32xf32>
    %cst_43 = arith.constant 1.000000e+00 : f32
    %95 = vector.broadcast %cst_43 : f32 to vector<2x32xf32>
    %96 = arith.addf %95, %94 : vector<2x32xf32>
    %97 = arith.divf %95, %96 : vector<2x32xf32>
    %98 = vector.extract_strided_slice %18 {offsets = [4, 0], sizes = [2, 32], strides = [1, 1]} : vector<16x32xf32> to vector<2x32xf32>
    %99 = arith.addf %98, %87 : vector<2x32xf32>
    %100 = arith.negf %99 : vector<2x32xf32>
    %101 = math.exp %100 : vector<2x32xf32>
    %cst_44 = arith.constant 1.000000e+00 : f32
    %102 = vector.broadcast %cst_44 : f32 to vector<2x32xf32>
    %103 = arith.addf %102, %101 : vector<2x32xf32>
    %104 = arith.divf %102, %103 : vector<2x32xf32>
    %105 = vector.extract_strided_slice %23 {offsets = [4, 0], sizes = [2, 32], strides = [1, 1]} : vector<16x32xf32> to vector<2x32xf32>
    %106 = arith.mulf %97, %90 : vector<2x32xf32>
    %107 = arith.addf %105, %106 : vector<2x32xf32>
    %108 = math.tanh %107 : vector<2x32xf32>
    %109 = arith.subf %84, %108 : vector<2x32xf32>
    %110 = arith.mulf %104, %109 : vector<2x32xf32>
    %111 = arith.addf %108, %110 : vector<2x32xf32>
    %112 = arith.truncf %111 : vector<2x32xf32> to vector<2x32xbf16>
    %cst_45 = arith.constant dense<0.000000e+00> : vector<2x32xf32>
    %113 = tpu.matmul %112, %25, %cst_45 {dimension_numbers = #tpu.dot_dimension_numbers<[1], [0], [0], [1], [0, 0, 1, 1], [], []>} : vector<2x32xbf16>, vector<32x32xbf16>, vector<2x32xf32> -> vector<2x32xf32>
    %cst_46 = arith.constant dense<0.000000e+00> : vector<2x32xf32>
    %114 = tpu.matmul %112, %27, %cst_46 {dimension_numbers = #tpu.dot_dimension_numbers<[1], [0], [0], [1], [0, 0, 1, 1], [], []>} : vector<2x32xbf16>, vector<32x32xbf16>, vector<2x32xf32> -> vector<2x32xf32>
    %cst_47 = arith.constant dense<0.000000e+00> : vector<2x32xf32>
    %115 = tpu.matmul %112, %29, %cst_47 {dimension_numbers = #tpu.dot_dimension_numbers<[1], [0], [0], [1], [0, 0, 1, 1], [], []>} : vector<2x32xbf16>, vector<32x32xbf16>, vector<2x32xf32> -> vector<2x32xf32>
    %116 = vector.broadcast %8 : vector<1x32xf32> to vector<2x32xf32>
    %117 = arith.addf %115, %116 : vector<2x32xf32>
    %118 = vector.extract_strided_slice %13 {offsets = [6, 0], sizes = [2, 32], strides = [1, 1]} : vector<16x32xf32> to vector<2x32xf32>
    %119 = arith.addf %118, %113 : vector<2x32xf32>
    %120 = arith.negf %119 : vector<2x32xf32>
    %121 = math.exp %120 : vector<2x32xf32>
    %cst_48 = arith.constant 1.000000e+00 : f32
    %122 = vector.broadcast %cst_48 : f32 to vector<2x32xf32>
    %123 = arith.addf %122, %121 : vector<2x32xf32>
    %124 = arith.divf %122, %123 : vector<2x32xf32>
    %125 = vector.extract_strided_slice %18 {offsets = [6, 0], sizes = [2, 32], strides = [1, 1]} : vector<16x32xf32> to vector<2x32xf32>
    %126 = arith.addf %125, %114 : vector<2x32xf32>
    %127 = arith.negf %126 : vector<2x32xf32>
    %128 = math.exp %127 : vector<2x32xf32>
    %cst_49 = arith.constant 1.000000e+00 : f32
    %129 = vector.broadcast %cst_49 : f32 to vector<2x32xf32>
    %130 = arith.addf %129, %128 : vector<2x32xf32>
    %131 = arith.divf %129, %130 : vector<2x32xf32>
    %132 = vector.extract_strided_slice %23 {offsets = [6, 0], sizes = [2, 32], strides = [1, 1]} : vector<16x32xf32> to vector<2x32xf32>
    %133 = arith.mulf %124, %117 : vector<2x32xf32>
    %134 = arith.addf %132, %133 : vector<2x32xf32>
    %135 = math.tanh %134 : vector<2x32xf32>
    %136 = arith.subf %111, %135 : vector<2x32xf32>
    %137 = arith.mulf %131, %136 : vector<2x32xf32>
    %138 = arith.addf %135, %137 : vector<2x32xf32>
    %139 = arith.truncf %138 : vector<2x32xf32> to vector<2x32xbf16>
    %cst_50 = arith.constant dense<0.000000e+00> : vector<2x32xf32>
    %140 = tpu.matmul %139, %25, %cst_50 {dimension_numbers = #tpu.dot_dimension_numbers<[1], [0], [0], [1], [0, 0, 1, 1], [], []>} : vector<2x32xbf16>, vector<32x32xbf16>, vector<2x32xf32> -> vector<2x32xf32>
    %cst_51 = arith.constant dense<0.000000e+00> : vector<2x32xf32>
    %141 = tpu.matmul %139, %27, %cst_51 {dimension_numbers = #tpu.dot_dimension_numbers<[1], [0], [0], [1], [0, 0, 1, 1], [], []>} : vector<2x32xbf16>, vector<32x32xbf16>, vector<2x32xf32> -> vector<2x32xf32>
    %cst_52 = arith.constant dense<0.000000e+00> : vector<2x32xf32>
    %142 = tpu.matmul %139, %29, %cst_52 {dimension_numbers = #tpu.dot_dimension_numbers<[1], [0], [0], [1], [0, 0, 1, 1], [], []>} : vector<2x32xbf16>, vector<32x32xbf16>, vector<2x32xf32> -> vector<2x32xf32>
    %143 = vector.broadcast %8 : vector<1x32xf32> to vector<2x32xf32>
    %144 = arith.addf %142, %143 : vector<2x32xf32>
    %145 = vector.extract_strided_slice %13 {offsets = [8, 0], sizes = [2, 32], strides = [1, 1]} : vector<16x32xf32> to vector<2x32xf32>
    %146 = arith.addf %145, %140 : vector<2x32xf32>
    %147 = arith.negf %146 : vector<2x32xf32>
    %148 = math.exp %147 : vector<2x32xf32>
    %cst_53 = arith.constant 1.000000e+00 : f32
    %149 = vector.broadcast %cst_53 : f32 to vector<2x32xf32>
    %150 = arith.addf %149, %148 : vector<2x32xf32>
    %151 = arith.divf %149, %150 : vector<2x32xf32>
    %152 = vector.extract_strided_slice %18 {offsets = [8, 0], sizes = [2, 32], strides = [1, 1]} : vector<16x32xf32> to vector<2x32xf32>
    %153 = arith.addf %152, %141 : vector<2x32xf32>
    %154 = arith.negf %153 : vector<2x32xf32>
    %155 = math.exp %154 : vector<2x32xf32>
    %cst_54 = arith.constant 1.000000e+00 : f32
    %156 = vector.broadcast %cst_54 : f32 to vector<2x32xf32>
    %157 = arith.addf %156, %155 : vector<2x32xf32>
    %158 = arith.divf %156, %157 : vector<2x32xf32>
    %159 = vector.extract_strided_slice %23 {offsets = [8, 0], sizes = [2, 32], strides = [1, 1]} : vector<16x32xf32> to vector<2x32xf32>
    %160 = arith.mulf %151, %144 : vector<2x32xf32>
    %161 = arith.addf %159, %160 : vector<2x32xf32>
    %162 = math.tanh %161 : vector<2x32xf32>
    %163 = arith.subf %138, %162 : vector<2x32xf32>
    %164 = arith.mulf %158, %163 : vector<2x32xf32>
    %165 = arith.addf %162, %164 : vector<2x32xf32>
    %166 = arith.truncf %165 : vector<2x32xf32> to vector<2x32xbf16>
    %cst_55 = arith.constant dense<0.000000e+00> : vector<2x32xf32>
    %167 = tpu.matmul %166, %25, %cst_55 {dimension_numbers = #tpu.dot_dimension_numbers<[1], [0], [0], [1], [0, 0, 1, 1], [], []>} : vector<2x32xbf16>, vector<32x32xbf16>, vector<2x32xf32> -> vector<2x32xf32>
    %cst_56 = arith.constant dense<0.000000e+00> : vector<2x32xf32>
    %168 = tpu.matmul %166, %27, %cst_56 {dimension_numbers = #tpu.dot_dimension_numbers<[1], [0], [0], [1], [0, 0, 1, 1], [], []>} : vector<2x32xbf16>, vector<32x32xbf16>, vector<2x32xf32> -> vector<2x32xf32>
    %cst_57 = arith.constant dense<0.000000e+00> : vector<2x32xf32>
    %169 = tpu.matmul %166, %29, %cst_57 {dimension_numbers = #tpu.dot_dimension_numbers<[1], [0], [0], [1], [0, 0, 1, 1], [], []>} : vector<2x32xbf16>, vector<32x32xbf16>, vector<2x32xf32> -> vector<2x32xf32>
    %170 = vector.broadcast %8 : vector<1x32xf32> to vector<2x32xf32>
    %171 = arith.addf %169, %170 : vector<2x32xf32>
    %172 = vector.extract_strided_slice %13 {offsets = [10, 0], sizes = [2, 32], strides = [1, 1]} : vector<16x32xf32> to vector<2x32xf32>
    %173 = arith.addf %172, %167 : vector<2x32xf32>
    %174 = arith.negf %173 : vector<2x32xf32>
    %175 = math.exp %174 : vector<2x32xf32>
    %cst_58 = arith.constant 1.000000e+00 : f32
    %176 = vector.broadcast %cst_58 : f32 to vector<2x32xf32>
    %177 = arith.addf %176, %175 : vector<2x32xf32>
    %178 = arith.divf %176, %177 : vector<2x32xf32>
    %179 = vector.extract_strided_slice %18 {offsets = [10, 0], sizes = [2, 32], strides = [1, 1]} : vector<16x32xf32> to vector<2x32xf32>
    %180 = arith.addf %179, %168 : vector<2x32xf32>
    %181 = arith.negf %180 : vector<2x32xf32>
    %182 = math.exp %181 : vector<2x32xf32>
    %cst_59 = arith.constant 1.000000e+00 : f32
    %183 = vector.broadcast %cst_59 : f32 to vector<2x32xf32>
    %184 = arith.addf %183, %182 : vector<2x32xf32>
    %185 = arith.divf %183, %184 : vector<2x32xf32>
    %186 = vector.extract_strided_slice %23 {offsets = [10, 0], sizes = [2, 32], strides = [1, 1]} : vector<16x32xf32> to vector<2x32xf32>
    %187 = arith.mulf %178, %171 : vector<2x32xf32>
    %188 = arith.addf %186, %187 : vector<2x32xf32>
    %189 = math.tanh %188 : vector<2x32xf32>
    %190 = arith.subf %165, %189 : vector<2x32xf32>
    %191 = arith.mulf %185, %190 : vector<2x32xf32>
    %192 = arith.addf %189, %191 : vector<2x32xf32>
    %193 = arith.truncf %192 : vector<2x32xf32> to vector<2x32xbf16>
    %cst_60 = arith.constant dense<0.000000e+00> : vector<2x32xf32>
    %194 = tpu.matmul %193, %25, %cst_60 {dimension_numbers = #tpu.dot_dimension_numbers<[1], [0], [0], [1], [0, 0, 1, 1], [], []>} : vector<2x32xbf16>, vector<32x32xbf16>, vector<2x32xf32> -> vector<2x32xf32>
    %cst_61 = arith.constant dense<0.000000e+00> : vector<2x32xf32>
    %195 = tpu.matmul %193, %27, %cst_61 {dimension_numbers = #tpu.dot_dimension_numbers<[1], [0], [0], [1], [0, 0, 1, 1], [], []>} : vector<2x32xbf16>, vector<32x32xbf16>, vector<2x32xf32> -> vector<2x32xf32>
    %cst_62 = arith.constant dense<0.000000e+00> : vector<2x32xf32>
    %196 = tpu.matmul %193, %29, %cst_62 {dimension_numbers = #tpu.dot_dimension_numbers<[1], [0], [0], [1], [0, 0, 1, 1], [], []>} : vector<2x32xbf16>, vector<32x32xbf16>, vector<2x32xf32> -> vector<2x32xf32>
    %197 = vector.broadcast %8 : vector<1x32xf32> to vector<2x32xf32>
    %198 = arith.addf %196, %197 : vector<2x32xf32>
    %199 = vector.extract_strided_slice %13 {offsets = [12, 0], sizes = [2, 32], strides = [1, 1]} : vector<16x32xf32> to vector<2x32xf32>
    %200 = arith.addf %199, %194 : vector<2x32xf32>
    %201 = arith.negf %200 : vector<2x32xf32>
    %202 = math.exp %201 : vector<2x32xf32>
    %cst_63 = arith.constant 1.000000e+00 : f32
    %203 = vector.broadcast %cst_63 : f32 to vector<2x32xf32>
    %204 = arith.addf %203, %202 : vector<2x32xf32>
    %205 = arith.divf %203, %204 : vector<2x32xf32>
    %206 = vector.extract_strided_slice %18 {offsets = [12, 0], sizes = [2, 32], strides = [1, 1]} : vector<16x32xf32> to vector<2x32xf32>
    %207 = arith.addf %206, %195 : vector<2x32xf32>
    %208 = arith.negf %207 : vector<2x32xf32>
    %209 = math.exp %208 : vector<2x32xf32>
    %cst_64 = arith.constant 1.000000e+00 : f32
    %210 = vector.broadcast %cst_64 : f32 to vector<2x32xf32>
    %211 = arith.addf %210, %209 : vector<2x32xf32>
    %212 = arith.divf %210, %211 : vector<2x32xf32>
    %213 = vector.extract_strided_slice %23 {offsets = [12, 0], sizes = [2, 32], strides = [1, 1]} : vector<16x32xf32> to vector<2x32xf32>
    %214 = arith.mulf %205, %198 : vector<2x32xf32>
    %215 = arith.addf %213, %214 : vector<2x32xf32>
    %216 = math.tanh %215 : vector<2x32xf32>
    %217 = arith.subf %192, %216 : vector<2x32xf32>
    %218 = arith.mulf %212, %217 : vector<2x32xf32>
    %219 = arith.addf %216, %218 : vector<2x32xf32>
    %220 = arith.truncf %219 : vector<2x32xf32> to vector<2x32xbf16>
    %cst_65 = arith.constant dense<0.000000e+00> : vector<2x32xf32>
    %221 = tpu.matmul %220, %25, %cst_65 {dimension_numbers = #tpu.dot_dimension_numbers<[1], [0], [0], [1], [0, 0, 1, 1], [], []>} : vector<2x32xbf16>, vector<32x32xbf16>, vector<2x32xf32> -> vector<2x32xf32>
    %cst_66 = arith.constant dense<0.000000e+00> : vector<2x32xf32>
    %222 = tpu.matmul %220, %27, %cst_66 {dimension_numbers = #tpu.dot_dimension_numbers<[1], [0], [0], [1], [0, 0, 1, 1], [], []>} : vector<2x32xbf16>, vector<32x32xbf16>, vector<2x32xf32> -> vector<2x32xf32>
    %cst_67 = arith.constant dense<0.000000e+00> : vector<2x32xf32>
    %223 = tpu.matmul %220, %29, %cst_67 {dimension_numbers = #tpu.dot_dimension_numbers<[1], [0], [0], [1], [0, 0, 1, 1], [], []>} : vector<2x32xbf16>, vector<32x32xbf16>, vector<2x32xf32> -> vector<2x32xf32>
    %224 = vector.broadcast %8 : vector<1x32xf32> to vector<2x32xf32>
    %225 = arith.addf %223, %224 : vector<2x32xf32>
    %226 = vector.extract_strided_slice %13 {offsets = [14, 0], sizes = [2, 32], strides = [1, 1]} : vector<16x32xf32> to vector<2x32xf32>
    %227 = arith.addf %226, %221 : vector<2x32xf32>
    %228 = arith.negf %227 : vector<2x32xf32>
    %229 = math.exp %228 : vector<2x32xf32>
    %cst_68 = arith.constant 1.000000e+00 : f32
    %230 = vector.broadcast %cst_68 : f32 to vector<2x32xf32>
    %231 = arith.addf %230, %229 : vector<2x32xf32>
    %232 = arith.divf %230, %231 : vector<2x32xf32>
    %233 = vector.extract_strided_slice %18 {offsets = [14, 0], sizes = [2, 32], strides = [1, 1]} : vector<16x32xf32> to vector<2x32xf32>
    %234 = arith.addf %233, %222 : vector<2x32xf32>
    %235 = arith.negf %234 : vector<2x32xf32>
    %236 = math.exp %235 : vector<2x32xf32>
    %cst_69 = arith.constant 1.000000e+00 : f32
    %237 = vector.broadcast %cst_69 : f32 to vector<2x32xf32>
    %238 = arith.addf %237, %236 : vector<2x32xf32>
    %239 = arith.divf %237, %238 : vector<2x32xf32>
    %240 = vector.extract_strided_slice %23 {offsets = [14, 0], sizes = [2, 32], strides = [1, 1]} : vector<16x32xf32> to vector<2x32xf32>
    %241 = arith.mulf %232, %225 : vector<2x32xf32>
    %242 = arith.addf %240, %241 : vector<2x32xf32>
    %243 = math.tanh %242 : vector<2x32xf32>
    %244 = arith.subf %219, %243 : vector<2x32xf32>
    %245 = arith.mulf %239, %244 : vector<2x32xf32>
    %246 = arith.addf %243, %245 : vector<2x32xf32>
    %c0_70 = arith.constant 0 : index
    %c0_71 = arith.constant 0 : index
    %247 = vector.load %arg8[%c0_70, %c0_71] : memref<2x32xf32, #tpu.memory_space<vmem>>, vector<2x32xf32>
    tpu.vector_store %arg8[%c0_70, %c0_71], %246 {strides = array<i32>} : memref<2x32xf32, #tpu.memory_space<vmem>>, vector<2x32xf32>,
    %248 = tpu.concatenate %57, %84, %111, %138, %165, %192, %219, %246 in 0 : vector<2x32xf32>, vector<2x32xf32>, vector<2x32xf32>, vector<2x32xf32>, vector<2x32xf32>, vector<2x32xf32>, vector<2x32xf32>, vector<2x32xf32> -> vector<16x32xf32>
    %249 = arith.truncf %248 : vector<16x32xf32> to vector<16x32xbf16>
    %c0_72 = arith.constant 0 : index
    %c0_73 = arith.constant 0 : index
    %250 = vector.load %arg4[%c0_72, %c0_73] : memref<32x16xbf16, #tpu.memory_space<vmem>>, vector<32x16xbf16>
    %cst_74 = arith.constant dense<0.000000e+00> : vector<16x16xf32>
    %251 = tpu.matmul %249, %250, %cst_74 {dimension_numbers = #tpu.dot_dimension_numbers<[1], [0], [0], [1], [0, 0, 1, 1], [], []>} : vector<16x32xbf16>, vector<32x16xbf16>, vector<16x16xf32> -> vector<16x16xf32>
    %c0_75 = arith.constant 0 : index
    %c0_76 = arith.constant 0 : index
    %252 = vector.load %arg6[%c0_75, %c0_76] : memref<1x16xf32, #tpu.memory_space<vmem>>, vector<1x16xf32>
    %253 = vector.broadcast %252 : vector<1x16xf32> to vector<16x16xf32>
    %254 = arith.addf %251, %253 : vector<16x16xf32>
    %255 = vector.shape_cast %254 : vector<16x16xf32> to vector<8x2x16xf32>
    %c0_77 = arith.constant 0 : index
    %c0_78 = arith.constant 0 : index
    %c0_79 = arith.constant 0 : index
    %256 = vector.load %arg7[%c0_77, %c0_78, %c0_79] : memref<8x2x16xf32, #tpu.memory_space<vmem>>, vector<8x2x16xf32>
    tpu.vector_store %arg7[%c0_77, %c0_78, %c0_79], %255 {strides = array<i32>} : memref<8x2x16xf32, #tpu.memory_space<vmem>>, vector<8x2x16xf32>,
    return
  }
  func.func @transform_0(%arg0: i32) -> (i32, i32, i32) {
    %c0_i32 = arith.constant 0 : i32
    %c0_i32_0 = arith.constant 0 : i32
    %c0_i32_1 = arith.constant 0 : i32
    return %arg0, %c0_i32, %c0_i32_0 : i32, i32, i32
  }
  func.func @transform_1(%arg0: i32) -> (i32, i32, i32) {
    %c0_i32 = arith.constant 0 : i32
    %c0_i32_0 = arith.constant 0 : i32
    %c0_i32_1 = arith.constant 0 : i32
    %c0_i32_2 = arith.constant 0 : i32
    return %c0_i32, %c0_i32_0, %c0_i32_1 : i32, i32, i32
  }
  func.func @transform_2(%arg0: i32) -> (i32, i32, i32) {
    %c0_i32 = arith.constant 0 : i32
    %c0_i32_0 = arith.constant 0 : i32
    %c0_i32_1 = arith.constant 0 : i32
    %c0_i32_2 = arith.constant 0 : i32
    return %c0_i32, %c0_i32_0, %c0_i32_1 : i32, i32, i32
  }
  func.func @transform_3(%arg0: i32) -> (i32, i32) {
    %c0_i32 = arith.constant 0 : i32
    %c0_i32_0 = arith.constant 0 : i32
    %c0_i32_1 = arith.constant 0 : i32
    return %c0_i32, %c0_i32_0 : i32, i32
  }
  func.func @transform_4(%arg0: i32) -> (i32, i32) {
    %c0_i32 = arith.constant 0 : i32
    %c0_i32_0 = arith.constant 0 : i32
    %c0_i32_1 = arith.constant 0 : i32
    return %c0_i32, %c0_i32_0 : i32, i32
  }
  func.func @transform_5(%arg0: i32) -> (i32, i32) {
    %c0_i32 = arith.constant 0 : i32
    %c0_i32_0 = arith.constant 0 : i32
    %c0_i32_1 = arith.constant 0 : i32
    return %c0_i32, %c0_i32_0 : i32, i32
  }
  func.func @transform_6(%arg0: i32) -> (i32, i32, i32) {
    %c0_i32 = arith.constant 0 : i32
    %c0_i32_0 = arith.constant 0 : i32
    %c0_i32_1 = arith.constant 0 : i32
    return %arg0, %c0_i32, %c0_i32_0 : i32, i32, i32
  }
}

</mosaic_0001>

<llo_original>
// kernel: tpu_custom_call.1
$region0: #{tpu_custom_call.1}
  #allocation0 [shape = 'u32[]', space=smem, size = 0x4, offset = 0x4, fixed_abs, tag = 'smem constant byte address 0x4 - core index']
  #allocation1 [shape = 'u32[144,128]{1,0:T(1,128)}', space=vmem, size = 0x12000, scoped, tag = 'internal scratch']
  #allocation2 [shape = 'f32[2,32]{1,0:T(2,128)}', space=vmem, size = 0x400, scoped, tag = 'scratch operand']
  %s0 = inlined_call_operand.hbm [shape: bf16[8,2,16], index: 0, kind: input, shape index: {}]
  %s1 = inlined_call_operand.vmem [shape: bf16[3,16,32], index: 1, kind: input, shape index: {}]
  %s2 = inlined_call_operand.hbm [shape: bf16[3,32,32], index: 2, kind: input, shape index: {}]
  %s3 = inlined_call_operand.vmem [shape: bf16[32,16], index: 3, kind: input, shape index: {}]
  %s4 = inlined_call_operand.vmem [shape: f32[4,32], index: 4, kind: input, shape index: {}]
  %s5 = inlined_call_operand.vmem [shape: f32[1,16], index: 5, kind: input, shape index: {}]
  %s6 = inlined_call_operand.hbm [shape: f32[8,2,16], index: 6, kind: output, shape index: {}]
  %s7 = sld [smem:[#allocation0]]
  $region46: #{tpu_custom_call.1} parent=0
    _
  %s9 = ssub.s32 1, %s7
  %s10 = scalar_select 0, %s9, %s7
  $region1: #{tpu_custom_call.1} parent=0
    #allocation3 [shape = 'u8[4096]{0}', space=vmem, size = 0x1000, scoped, tag = 'input window, operand 0, single buffered']
    #allocation4 [shape = 's32[1]{0}', space=sflag, size = 0x4, scoped, tag = 'scoped memory for tpu_custom_call.1']
    #allocation5 [shape = 's32[1]{0}', space=sflag, size = 0x4, scoped, tag = 'scoped memory for tpu_custom_call.1']
    #allocation6 [shape = 'u8[24576]{0}', space=vmem, size = 0x6000, scoped, tag = 'input window, operand 2, single buffered']
    #allocation7 [shape = 's32[1]{0}', space=sflag, size = 0x4, scoped, tag = 'scoped memory for tpu_custom_call.1']
    #allocation8 [shape = 'u8[8192]{0}', space=vmem, size = 0x2000, scoped, tag = 'output window, operand 0, single buffered']
    %11 = vsyncpa [#allocation4], 0
    %12 = vsyncpa [#allocation7], 0
    %13 = vsyncpa [#allocation5], 0
    // Predicated region
    $region2: #{tpu_custom_call.1} parent=1 // pred_check
      _
    $region3: #{tpu_custom_call.1} parent=1 // pred_check_branch
      %15 = sbr.rel (0) target = $region5
    $region4: #{tpu_custom_call.1} parent=1 // pred_region
      %s17 = ssub.s32 128, 128
      %18 = vsyncadd [#allocation4], %s17
      %s19 = sshll.u32 [#allocation3], 4
      %s20 = int_to_ptr.vmem [resolvable:$true] %s19
      %25 = dma.hbm_to_vmem [thread:$0]  %s0, 128, %s20, [#allocation4], 16, 16, 1
    $region5: #{tpu_custom_call.1} parent=1 // pred_fallthru
      _
    // Predicated region
    $region6: #{tpu_custom_call.1} parent=1 // pred_check
      _
    $region7: #{tpu_custom_call.1} parent=1 // pred_check_branch
      %27 = sbr.rel (0) target = $region9
    $region8: #{tpu_custom_call.1} parent=1 // pred_region
      _
    $region9: #{tpu_custom_call.1} parent=1 // pred_fallthru
      _
    // Predicated region
    $region10: #{tpu_custom_call.1} parent=1 // pred_check
      _
    $region11: #{tpu_custom_call.1} parent=1 // pred_check_branch
      %29 = sbr.rel (0) target = $region13
    $region12: #{tpu_custom_call.1} parent=1 // pred_region
      %s31 = ssub.s32 768, 768
      %32 = vsyncadd [#allocation7], %s31
      %s33 = sshll.u32 [#allocation6], 4
      %s34 = int_to_ptr.vmem [resolvable:$true] %s33
      %39 = dma.hbm_to_vmem [thread:$0]  %s2, 768, %s34, [#allocation7], 64, 64, 4
    $region13: #{tpu_custom_call.1} parent=1 // pred_fallthru
      _
    // Predicated region
    $region14: #{tpu_custom_call.1} parent=1 // pred_check
      _
    $region15: #{tpu_custom_call.1} parent=1 // pred_check_branch
      %41 = sbr.rel (0) target = $region17
    $region16: #{tpu_custom_call.1} parent=1 // pred_region
      _
    $region17: #{tpu_custom_call.1} parent=1 // pred_fallthru
      _
    // Predicated region
    $region18: #{tpu_custom_call.1} parent=1 // pred_check
      _
    $region19: #{tpu_custom_call.1} parent=1 // pred_check_branch
      %43 = sbr.rel (0) target = $region21
    $region20: #{tpu_custom_call.1} parent=1 // pred_region
      _
    $region21: #{tpu_custom_call.1} parent=1 // pred_fallthru
      _
    // Predicated region
    $region22: #{tpu_custom_call.1} parent=1 // pred_check
      _
    $region23: #{tpu_custom_call.1} parent=1 // pred_check_branch
      %45 = sbr.rel (0) target = $region25
    $region24: #{tpu_custom_call.1} parent=1 // pred_region
      _
    $region25: #{tpu_custom_call.1} parent=1 // pred_fallthru
      _
    // Predicated region
    $region26: #{tpu_custom_call.1} parent=1 // pred_check
      _
    $region27: #{tpu_custom_call.1} parent=1 // pred_check_branch
      %47 = sbr.rel (0) target = $region29
    $region28: #{tpu_custom_call.1} parent=1 // pred_region
      %48 = dma.done [#allocation4], 128
    $region29: #{tpu_custom_call.1} parent=1 // pred_fallthru
      _
    // Predicated region
    $region30: #{tpu_custom_call.1} parent=1 // pred_check
      _
    $region31: #{tpu_custom_call.1} parent=1 // pred_check_branch
      %50 = sbr.rel (0) target = $region33
    $region32: #{tpu_custom_call.1} parent=1 // pred_region
      %51 = dma.done [#allocation7], 768
    $region33: #{tpu_custom_call.1} parent=1 // pred_fallthru
      _
    %p53 = scmp.eq.s32.totalorder 0, 0
    // Predicated region
    $region34: #{tpu_custom_call.1} parent=1 // pred_check
      %p54 = pneg %p53
    $region35: #{tpu_custom_call.1} parent=1 // pred_check_branch
      %56 = sbr.rel (%p54) target = $region37
    $region36: #{tpu_custom_call.1} parent=1 // pred_region
      %vm57 = vcmask 254976
      %58 = vst.msk [vmem:[#allocation2] sm:$0x3] %vm57, 0.0
    $region37: #{tpu_custom_call.1} parent=1 // pred_fallthru
      _
    %v59 = vld [vmem:[#allocation3] sm:$0x1]
    %v60 = vld [vmem:[#allocation3 + $0x1] sm:$0x1]
    %v61 = vld [vmem:[#allocation3 + $0x2] sm:$0x1]
    %v62 = vld [vmem:[#allocation3 + $0x3] sm:$0x1]
    %v63 = vld [vmem:[#allocation3 + $0x4] sm:$0x1]
    %v64 = vld [vmem:[#allocation3 + $0x5] sm:$0x1]
    %v65 = vld [vmem:[#allocation3 + $0x6] sm:$0x1]
    %v66 = vld [vmem:[#allocation3 + $0x7] sm:$0x1]
    %v67 = vld [vmem:[%s4] sm:$0x1]
    %v68 = vld [vmem:[%s4 + $0x1] sm:$0x1]
    %v69 = vld [vmem:[%s4 + $0x2] sm:$0x1]
    %v70 = vld [vmem:[%s4 + $0x3] sm:$0x1]
    %v71 = vld [vmem:[%s1] sm:$0xf]
    %v72 = vld [vmem:[%s1 + $0x4] sm:$0xf]
    %v73 = vlaneseq
    %v74 = vshrl.u32 %v73, 7
    %v75 = vsub.s32 0, %v74
    %v76 = vrot.slane %v67, %v75
    %v85 = vcombine.low %v59, %v60
    %v86 = vcombine.low %v61, %v62
    %v87 = vcombine.low %v63, %v64
    %v88 = vcombine.low %v65, %v66
    %v90 = vunpack.c.l.s4 1966171168
    %v91 = vunpack.c.0.s8 %v90
    %v92 = vlaneseq
    %v93 = vshrl.u32 %v92, 7
    %v94 = vsub.s32 %v91, %v93
    %v95 = vrot.slane %v85, %v94
    %v97 = vunpack.c.l.s4 1966171168
    %v98 = vunpack.c.0.s8 %v97
    %v99 = vlaneseq
    %v100 = vshrl.u32 %v99, 7
    %v101 = vsub.s32 %v98, %v100
    %v102 = vrot.slane %v86, %v101
    %v104 = vunpack.c.l.s4 1966171168
    %v105 = vunpack.c.0.s8 %v104
    %v106 = vlaneseq
    %v107 = vshrl.u32 %v106, 7
    %v108 = vsub.s32 %v105, %v107
    %v109 = vrot.slane %v87, %v108
    %v111 = vunpack.c.l.s4 1966171168
    %v112 = vunpack.c.0.s8 %v111
    %v113 = vlaneseq
    %v114 = vshrl.u32 %v113, 7
    %v115 = vsub.s32 %v112, %v114
    %v116 = vrot.slane %v88, %v115
    %v117 = vcombine.low %v95, %v102
    %v118 = vcombine.low %v109, %v116
    %v120 = vunpack.c.l.s4 1966171168
    %v121 = vunpack.c.0.s8 %v120
    %v122 = vlaneseq
    %v123 = vshrl.u32 %v122, 7
    %v124 = vsub.s32 %v121, %v123
    %v125 = vrot.slane %v117, %v124
    %v127 = vunpack.c.l.s4 1966171168
    %v128 = vunpack.c.0.s8 %v127
    %v129 = vlaneseq
    %v130 = vshrl.u32 %v129, 7
    %v131 = vsub.s32 %v128, %v130
    %v132 = vrot.slane %v118, %v131
    %v133 = vcombine.low %v125, %v132
    %v136 = vunpack.c.l.b16 %v71
    %v137 = vunpack.c.l.b16 %v72
    %v138 = vpack.c.b16 %v137, %v136
    %vm140 = vcmask 130048
    %v142 = vsel %vm140, %v133, 0
    %144 = vmatprep.subr.bf16.mxu0 0
    %145 = vmatpush1.bf16.msra.mxu0 %v138
    %146 = vmatprep.subr.bf16.mxu0 0
    %147 = vmatpush1.bf16.msra.mxu0 0
    %148 = vmatprep.subr.bf16.mxu0 0
    %149 = vmatpush1.bf16.msra.mxu0 0
    %150 = vmatprep.subr.bf16.mxu0 0
    %151 = vmatpush1.bf16.msra.mxu0 0
    %152 = vmatprep.subr.bf16.mxu0 0
    %153 = vmatpush1.bf16.msra.mxu0 0
    %154 = vmatprep.subr.bf16.mxu0 0
    %155 = vmatpush1.bf16.msra.mxu0 0
    %156 = vmatprep.subr.bf16.mxu0 0
    %157 = vmatpush1.bf16.msra.mxu0 0
    %158 = vmatprep.subr.bf16.mxu0 0
    %159 = vmatpush1.bf16.msra.mxu0 0
    %160 = vmatprep.subr.bf16.mxu0 0
    %161 = vmatpush1.bf16.msra.mxu0 0
    %162 = vmatprep.subr.bf16.mxu0 0
    %163 = vmatpush1.bf16.msra.mxu0 0
    %164 = vmatprep.subr.bf16.mxu0 0
    %165 = vmatpush1.bf16.msra.mxu0 0
    %166 = vmatprep.subr.bf16.mxu0 0
    %167 = vmatpush1.bf16.msra.mxu0 0
    %168 = vmatprep.subr.bf16.mxu0 0
    %169 = vmatpush1.bf16.msra.mxu0 0
    %170 = vmatprep.subr.bf16.mxu0 0
    %171 = vmatpush1.bf16.msra.mxu0 0
    %172 = vmatprep.subr.bf16.mxu0 0
    %173 = vmatpush1.bf16.msra.mxu0 0
    %174 = vmatprep.subr.bf16.mxu0 0
    %175 = vmatpush1.bf16.msra.mxu0 0
    %176 = vmatprep.mubr.bf16.mxu0 0
    %177 = vmatmul.mubr.bf16.gmra.mrb[0].mxu0 %v142
    %v178 = vpop.f32.mrb[0].mxu0
    %v179 = vadd.f32 %v76, %v178
    %v180 = vpop.f32.mrb[0].mxu0
    %v181 = vpop.f32.mrb[0].mxu0
    %v182 = vadd.f32 %v76, %v181
    %v183 = vpop.f32.mrb[0].mxu0
    %184 = vdwg.mxu0
    %s185 = scalar_lea.vmem %s1, 8
    %v186 = vld [vmem:[%s185] sm:$0xf]
    %v187 = vld [vmem:[%s185 + $0x4] sm:$0xf]
    %v188 = vlaneseq
    %v189 = vshrl.u32 %v188, 7
    %v190 = vsub.s32 0, %v189
    %v191 = vrot.slane %v68, %v190
    %v194 = vunpack.c.l.b16 %v186
    %v195 = vunpack.c.l.b16 %v187
    %v196 = vpack.c.b16 %v195, %v194
    %198 = vmatprep.subr.bf16.mxu0 0
    %199 = vmatpush1.bf16.msra.mxu0 %v196
    %200 = vmatprep.subr.bf16.mxu0 0
    %201 = vmatpush1.bf16.msra.mxu0 0
    %202 = vmatprep.subr.bf16.mxu0 0
    %203 = vmatpush1.bf16.msra.mxu0 0
    %204 = vmatprep.subr.bf16.mxu0 0
    %205 = vmatpush1.bf16.msra.mxu0 0
    %206 = vmatprep.subr.bf16.mxu0 0
    %207 = vmatpush1.bf16.msra.mxu0 0
    %208 = vmatprep.subr.bf16.mxu0 0
    %209 = vmatpush1.bf16.msra.mxu0 0
    %210 = vmatprep.subr.bf16.mxu0 0
    %211 = vmatpush1.bf16.msra.mxu0 0
    %212 = vmatprep.subr.bf16.mxu0 0
    %213 = vmatpush1.bf16.msra.mxu0 0
    %214 = vmatprep.subr.bf16.mxu0 0
    %215 = vmatpush1.bf16.msra.mxu0 0
    %216 = vmatprep.subr.bf16.mxu0 0
    %217 = vmatpush1.bf16.msra.mxu0 0
    %218 = vmatprep.subr.bf16.mxu0 0
    %219 = vmatpush1.bf16.msra.mxu0 0
    %220 = vmatprep.subr.bf16.mxu0 0
    %221 = vmatpush1.bf16.msra.mxu0 0
    %222 = vmatprep.subr.bf16.mxu0 0
    %223 = vmatpush1.bf16.msra.mxu0 0
    %224 = vmatprep.subr.bf16.mxu0 0
    %225 = vmatpush1.bf16.msra.mxu0 0
    %226 = vmatprep.subr.bf16.mxu0 0
    %227 = vmatpush1.bf16.msra.mxu0 0
    %228 = vmatprep.subr.bf16.mxu0 0
    %229 = vmatpush1.bf16.msra.mxu0 0
    %230 = vmatprep.mubr.bf16.mxu0 0
    %231 = vmatmul.mubr.bf16.gmra.mrb[0].mxu0 %v142
    %v232 = vpop.f32.mrb[0].mxu0
    %v233 = vadd.f32 %v191, %v232
    %v234 = vpop.f32.mrb[0].mxu0
    %v235 = vpop.f32.mrb[0].mxu0
    %v236 = vadd.f32 %v191, %v235
    %v237 = vpop.f32.mrb[0].mxu0
    %238 = vdwg.mxu0
    %s239 = scalar_lea.vmem %s1, 16
    %v240 = vld [vmem:[%s239] sm:$0xf]
    %v241 = vld [vmem:[%s239 + $0x4] sm:$0xf]
    %v242 = vlaneseq
    %v243 = vshrl.u32 %v242, 7
    %v244 = vsub.s32 0, %v243
    %v245 = vrot.slane %v69, %v244
    %v248 = vunpack.c.l.b16 %v240
    %v249 = vunpack.c.l.b16 %v241
    %v250 = vpack.c.b16 %v249, %v248
    %252 = vmatprep.subr.bf16.mxu0 0
    %253 = vmatpush1.bf16.msra.mxu0 %v250
    %254 = vmatprep.subr.bf16.mxu0 0
    %255 = vmatpush1.bf16.msra.mxu0 0
    %256 = vmatprep.subr.bf16.mxu0 0
    %257 = vmatpush1.bf16.msra.mxu0 0
    %258 = vmatprep.subr.bf16.mxu0 0
    %259 = vmatpush1.bf16.msra.mxu0 0
    %260 = vmatprep.subr.bf16.mxu0 0
    %261 = vmatpush1.bf16.msra.mxu0 0
    %262 = vmatprep.subr.bf16.mxu0 0
    %263 = vmatpush1.bf16.msra.mxu0 0
    %264 = vmatprep.subr.bf16.mxu0 0
    %265 = vmatpush1.bf16.msra.mxu0 0
    %266 = vmatprep.subr.bf16.mxu0 0
    %267 = vmatpush1.bf16.msra.mxu0 0
    %268 = vmatprep.subr.bf16.mxu0 0
    %269 = vmatpush1.bf16.msra.mxu0 0
    %270 = vmatprep.subr.bf16.mxu0 0
    %271 = vmatpush1.bf16.msra.mxu0 0
    %272 = vmatprep.subr.bf16.mxu0 0
    %273 = vmatpush1.bf16.msra.mxu0 0
    %274 = vmatprep.subr.bf16.mxu0 0
    %275 = vmatpush1.bf16.msra.mxu0 0
    %276 = vmatprep.subr.bf16.mxu0 0
    %277 = vmatpush1.bf16.msra.mxu0 0
    %278 = vmatprep.subr.bf16.mxu0 0
    %279 = vmatpush1.bf16.msra.mxu0 0
    %280 = vmatprep.subr.bf16.mxu0 0
    %281 = vmatpush1.bf16.msra.mxu0 0
    %282 = vmatprep.subr.bf16.mxu0 0
    %283 = vmatpush1.bf16.msra.mxu0 0
    %284 = vmatprep.mubr.bf16.mxu0 0
    %285 = vmatmul.mubr.bf16.gmra.mrb[0].mxu0 %v142
    %v286 = vpop.f32.mrb[0].mxu0
    %v287 = vadd.f32 %v245, %v286
    %v288 = vpop.f32.mrb[0].mxu0
    %v289 = vpop.f32.mrb[0].mxu0
    %v290 = vadd.f32 %v245, %v289
    %v291 = vpop.f32.mrb[0].mxu0
    %292 = vdwg.mxu0
    %v293 = vld [vmem:[#allocation6] sm:$0xf]
    %v294 = vld [vmem:[#allocation6 + $0x4] sm:$0xf]
    %v295 = vld [vmem:[#allocation6 + $0x8] sm:$0xf]
    %v296 = vld [vmem:[#allocation6 + $0xc] sm:$0xf]
    %s297 = scalar_lea.vmem [#allocation6], 16
    %v298 = vld [vmem:[%s297] sm:$0xf]
    %v299 = vld [vmem:[%s297 + $0x4] sm:$0xf]
    %v300 = vld [vmem:[%s297 + $0x8] sm:$0xf]
    %v301 = vld [vmem:[%s297 + $0xc] sm:$0xf]
    %s302 = scalar_lea.vmem [#allocation6], 32
    %v303 = vld [vmem:[%s302] sm:$0xf]
    %v304 = vld [vmem:[%s302 + $0x4] sm:$0xf]
    %v305 = vld [vmem:[%s302 + $0x8] sm:$0xf]
    %v306 = vld [vmem:[%s302 + $0xc] sm:$0xf]
    %v307 = vld [vmem:[#allocation2] sm:$0x3]
    %v308 = vpack.c.bf16 %v307, %v307
    %v313 = vunpack.c.l.b16 %v293
    %v314 = vunpack.c.l.b16 %v294
    %v315 = vunpack.c.l.b16 %v295
    %v316 = vunpack.c.l.b16 %v296
    %v317 = vpack.c.b16 %v314, %v313
    %v318 = vpack.c.b16 %v316, %v315
    %vm321 = vcmask 261120
    %v323 = vsel %vm321, %v308, 0
    %325 = vmatprep.subr.bf16.mxu0 0
    %326 = vmatpush1.bf16.msra.mxu0 %v317
    %327 = vmatprep.subr.bf16.mxu0 0
    %328 = vmatpush1.bf16.msra.mxu0 %v318
    %329 = vmatprep.subr.bf16.mxu0 0
    %330 = vmatpush1.bf16.msra.mxu0 0
    %331 = vmatprep.subr.bf16.mxu0 0
    %332 = vmatpush1.bf16.msra.mxu0 0
    %333 = vmatprep.subr.bf16.mxu0 0
    %334 = vmatpush1.bf16.msra.mxu0 0
    %335 = vmatprep.subr.bf16.mxu0 0
    %336 = vmatpush1.bf16.msra.mxu0 0
    %337 = vmatprep.subr.bf16.mxu0 0
    %338 = vmatpush1.bf16.msra.mxu0 0
    %339 = vmatprep.subr.bf16.mxu0 0
    %340 = vmatpush1.bf16.msra.mxu0 0
    %341 = vmatprep.subr.bf16.mxu0 0
    %342 = vmatpush1.bf16.msra.mxu0 0
    %343 = vmatprep.subr.bf16.mxu0 0
    %344 = vmatpush1.bf16.msra.mxu0 0
    %345 = vmatprep.subr.bf16.mxu0 0
    %346 = vmatpush1.bf16.msra.mxu0 0
    %347 = vmatprep.subr.bf16.mxu0 0
    %348 = vmatpush1.bf16.msra.mxu0 0
    %349 = vmatprep.subr.bf16.mxu0 0
    %350 = vmatpush1.bf16.msra.mxu0 0
    %351 = vmatprep.subr.bf16.mxu0 0
    %352 = vmatpush1.bf16.msra.mxu0 0
    %353 = vmatprep.subr.bf16.mxu0 0
    %354 = vmatpush1.bf16.msra.mxu0 0
    %355 = vmatprep.subr.bf16.mxu0 0
    %356 = vmatpush1.bf16.msra.mxu0 0
    %357 = vmatprep.mubr.bf16.mxu0 0
    %358 = vmatmul.mubr.bf16.gmra.mrb[0].mxu0 %v323
    %v359 = vpop.f32.mrb[0].mxu0
    %v360 = vadd.f32 0.0, %v359
    %v361 = vpop.f32.mrb[0].mxu0
    %v362 = vpop.f32.mrb[0].mxu0
    %v363 = vpop.f32.mrb[0].mxu0
    %364 = vdwg.mxu0
    %v369 = vunpack.c.l.b16 %v298
    %v370 = vunpack.c.l.b16 %v299
    %v371 = vunpack.c.l.b16 %v300
    %v372 = vunpack.c.l.b16 %v301
    %v373 = vpack.c.b16 %v370, %v369
    %v374 = vpack.c.b16 %v372, %v371
    %377 = vmatprep.subr.bf16.mxu0 0
    %378 = vmatpush1.bf16.msra.mxu0 %v373
    %379 = vmatprep.subr.bf16.mxu0 0
    %380 = vmatpush1.bf16.msra.mxu0 %v374
    %381 = vmatprep.subr.bf16.mxu0 0
    %382 = vmatpush1.bf16.msra.mxu0 0
    %383 = vmatprep.subr.bf16.mxu0 0
    %384 = vmatpush1.bf16.msra.mxu0 0
    %385 = vmatprep.subr.bf16.mxu0 0
    %386 = vmatpush1.bf16.msra.mxu0 0
    %387 = vmatprep.subr.bf16.mxu0 0
    %388 = vmatpush1.bf16.msra.mxu0 0
    %389 = vmatprep.subr.bf16.mxu0 0
    %390 = vmatpush1.bf16.msra.mxu0 0
    %391 = vmatprep.subr.bf16.mxu0 0
    %392 = vmatpush1.bf16.msra.mxu0 0
    %393 = vmatprep.subr.bf16.mxu0 0
    %394 = vmatpush1.bf16.msra.mxu0 0
    %395 = vmatprep.subr.bf16.mxu0 0
    %396 = vmatpush1.bf16.msra.mxu0 0
    %397 = vmatprep.subr.bf16.mxu0 0
    %398 = vmatpush1.bf16.msra.mxu0 0
    %399 = vmatprep.subr.bf16.mxu0 0
    %400 = vmatpush1.bf16.msra.mxu0 0
    %401 = vmatprep.subr.bf16.mxu0 0
    %402 = vmatpush1.bf16.msra.mxu0 0
    %403 = vmatprep.subr.bf16.mxu0 0
    %404 = vmatpush1.bf16.msra.mxu0 0
    %405 = vmatprep.subr.bf16.mxu0 0
    %406 = vmatpush1.bf16.msra.mxu0 0
    %407 = vmatprep.subr.bf16.mxu0 0
    %408 = vmatpush1.bf16.msra.mxu0 0
    %409 = vmatprep.mubr.bf16.mxu0 0
    %410 = vmatmul.mubr.bf16.gmra.mrb[0].mxu0 %v323
    %v411 = vpop.f32.mrb[0].mxu0
    %v412 = vadd.f32 0.0, %v411
    %v413 = vpop.f32.mrb[0].mxu0
    %v414 = vpop.f32.mrb[0].mxu0
    %v415 = vpop.f32.mrb[0].mxu0
    %416 = vdwg.mxu0
    %v417 = vlaneseq
    %v418 = vshrl.u32 %v417, 7
    %v419 = vsub.s32 0, %v418
    %v420 = vrot.slane %v70, %v419
    %v425 = vunpack.c.l.b16 %v303
    %v426 = vunpack.c.l.b16 %v304
    %v427 = vunpack.c.l.b16 %v305
    %v428 = vunpack.c.l.b16 %v306
    %v429 = vpack.c.b16 %v426, %v425
    %v430 = vpack.c.b16 %v428, %v427
    %433 = vmatprep.subr.bf16.mxu0 0
    %434 = vmatpush1.bf16.msra.mxu0 %v429
    %435 = vmatprep.subr.bf16.mxu0 0
    %436 = vmatpush1.bf16.msra.mxu0 %v430
    %437 = vmatprep.subr.bf16.mxu0 0
    %438 = vmatpush1.bf16.msra.mxu0 0
    %439 = vmatprep.subr.bf16.mxu0 0
    %440 = vmatpush1.bf16.msra.mxu0 0
    %441 = vmatprep.subr.bf16.mxu0 0
    %442 = vmatpush1.bf16.msra.mxu0 0
    %443 = vmatprep.subr.bf16.mxu0 0
    %444 = vmatpush1.bf16.msra.mxu0 0
    %445 = vmatprep.subr.bf16.mxu0 0
    %446 = vmatpush1.bf16.msra.mxu0 0
    %447 = vmatprep.subr.bf16.mxu0 0
    %448 = vmatpush1.bf16.msra.mxu0 0
    %449 = vmatprep.subr.bf16.mxu0 0
    %450 = vmatpush1.bf16.msra.mxu0 0
    %451 = vmatprep.subr.bf16.mxu0 0
    %452 = vmatpush1.bf16.msra.mxu0 0
    %453 = vmatprep.subr.bf16.mxu0 0
    %454 = vmatpush1.bf16.msra.mxu0 0
    %455 = vmatprep.subr.bf16.mxu0 0
    %456 = vmatpush1.bf16.msra.mxu0 0
    %457 = vmatprep.subr.bf16.mxu0 0
    %458 = vmatpush1.bf16.msra.mxu0 0
    %459 = vmatprep.subr.bf16.mxu0 0
    %460 = vmatpush1.bf16.msra.mxu0 0
    %461 = vmatprep.subr.bf16.mxu0 0
    %462 = vmatpush1.bf16.msra.mxu0 0
    %463 = vmatprep.subr.bf16.mxu0 0
    %464 = vmatpush1.bf16.msra.mxu0 0
    %465 = vmatprep.mubr.bf16.mxu0 0
    %466 = vmatmul.mubr.bf16.gmra.mrb[0].mxu0 %v323
    %v467 = vpop.f32.mrb[0].mxu0
    %v468 = vadd.f32 %v420, %v467
    %v469 = vpop.f32.mrb[0].mxu0
    %v470 = vpop.f32.mrb[0].mxu0
    %v471 = vpop.f32.mrb[0].mxu0
    %472 = vdwg.mxu0
    %v473 = vadd.f32 %v179, %v360
    %v474 = vxor.u32 %v473, 2147483648
    %v475 = vmul.f32 %v474, 1.442695
    %v476 = vpow.pop %v475
    %v477 = vadd.f32 %v476, 1.0
    %v478 = vrcp.pop %v477
    %v479 = vmul.f32 1.0, %v478
    %v480 = vadd.f32 %v233, %v412
    %v481 = vxor.u32 %v480, 2147483648
    %v482 = vmul.f32 %v481, 1.442695
    %v483 = vpow.pop %v482
    %v484 = vadd.f32 %v483, 1.0
    %v485 = vrcp.pop %v484
    %v486 = vmul.f32 1.0, %v485
    %v487 = vmul.f32 %v479, %v468
    %v488 = vadd.f32 %v287, %v487
    %v489 = vtanh.pop %v488
    %v490 = vsub.f32 %v307, %v489
    %v491 = vmul.f32 %v486, %v490
    %v492 = vadd.f32 %v489, %v491
    %v493 = vpack.c.bf16 %v492, %v492
    %v495 = vsel %vm321, %v493, 0
    %497 = vmatprep.subr.bf16.mxu0 0
    %498 = vmatpush1.bf16.msra.mxu0 %v317
    %499 = vmatprep.subr.bf16.mxu0 0
    %500 = vmatpush1.bf16.msra.mxu0 %v318
    %501 = vmatprep.subr.bf16.mxu0 0
    %502 = vmatpush1.bf16.msra.mxu0 0
    %503 = vmatprep.subr.bf16.mxu0 0
    %504 = vmatpush1.bf16.msra.mxu0 0
    %505 = vmatprep.subr.bf16.mxu0 0
    %506 = vmatpush1.bf16.msra.mxu0 0
    %507 = vmatprep.subr.bf16.mxu0 0
    %508 = vmatpush1.bf16.msra.mxu0 0
    %509 = vmatprep.subr.bf16.mxu0 0
    %510 = vmatpush1.bf16.msra.mxu0 0
    %511 = vmatprep.subr.bf16.mxu0 0
    %512 = vmatpush1.bf16.msra.mxu0 0
    %513 = vmatprep.subr.bf16.mxu0 0
    %514 = vmatpush1.bf16.msra.mxu0 0
    %515 = vmatprep.subr.bf16.mxu0 0
    %516 = vmatpush1.bf16.msra.mxu0 0
    %517 = vmatprep.subr.bf16.mxu0 0
    %518 = vmatpush1.bf16.msra.mxu0 0
    %519 = vmatprep.subr.bf16.mxu0 0
    %520 = vmatpush1.bf16.msra.mxu0 0
    %521 = vmatprep.subr.bf16.mxu0 0
    %522 = vmatpush1.bf16.msra.mxu0 0
    %523 = vmatprep.subr.bf16.mxu0 0
    %524 = vmatpush1.bf16.msra.mxu0 0
    %525 = vmatprep.subr.bf16.mxu0 0
    %526 = vmatpush1.bf16.msra.mxu0 0
    %527 = vmatprep.subr.bf16.mxu0 0
    %528 = vmatpush1.bf16.msra.mxu0 0
    %529 = vmatprep.mubr.bf16.mxu0 0
    %530 = vmatmul.mubr.bf16.gmra.mrb[0].mxu0 %v495
    %v531 = vpop.f32.mrb[0].mxu0
    %v532 = vadd.f32 0.0, %v531
    %v533 = vpop.f32.mrb[0].mxu0
    %v534 = vpop.f32.mrb[0].mxu0
    %v535 = vpop.f32.mrb[0].mxu0
    %536 = vdwg.mxu0
    %537 = vmatprep.subr.bf16.mxu0 0
    %538 = vmatpush1.bf16.msra.mxu0 %v373
    %539 = vmatprep.subr.bf16.mxu0 0
    %540 = vmatpush1.bf16.msra.mxu0 %v374
    %541 = vmatprep.subr.bf16.mxu0 0
    %542 = vmatpush1.bf16.msra.mxu0 0
    %543 = vmatprep.subr.bf16.mxu0 0
    %544 = vmatpush1.bf16.msra.mxu0 0
    %545 = vmatprep.subr.bf16.mxu0 0
    %546 = vmatpush1.bf16.msra.mxu0 0
    %547 = vmatprep.subr.bf16.mxu0 0
    %548 = vmatpush1.bf16.msra.mxu0 0
    %549 = vmatprep.subr.bf16.mxu0 0
    %550 = vmatpush1.bf16.msra.mxu0 0
    %551 = vmatprep.subr.bf16.mxu0 0
    %552 = vmatpush1.bf16.msra.mxu0 0
    %553 = vmatprep.subr.bf16.mxu0 0
    %554 = vmatpush1.bf16.msra.mxu0 0
    %555 = vmatprep.subr.bf16.mxu0 0
    %556 = vmatpush1.bf16.msra.mxu0 0
    %557 = vmatprep.subr.bf16.mxu0 0
    %558 = vmatpush1.bf16.msra.mxu0 0
    %559 = vmatprep.subr.bf16.mxu0 0
    %560 = vmatpush1.bf16.msra.mxu0 0
    %561 = vmatprep.subr.bf16.mxu0 0
    %562 = vmatpush1.bf16.msra.mxu0 0
    %563 = vmatprep.subr.bf16.mxu0 0
    %564 = vmatpush1.bf16.msra.mxu0 0
    %565 = vmatprep.subr.bf16.mxu0 0
    %566 = vmatpush1.bf16.msra.mxu0 0
    %567 = vmatprep.subr.bf16.mxu0 0
    %568 = vmatpush1.bf16.msra.mxu0 0
    %569 = vmatprep.mubr.bf16.mxu0 0
    %570 = vmatmul.mubr.bf16.gmra.mrb[0].mxu0 %v495
    %v571 = vpop.f32.mrb[0].mxu0
    %v572 = vadd.f32 0.0, %v571
    %v573 = vpop.f32.mrb[0].mxu0
    %v574 = vpop.f32.mrb[0].mxu0
    %v575 = vpop.f32.mrb[0].mxu0
    %576 = vdwg.mxu0
    %577 = vmatprep.subr.bf16.mxu0 0
    %578 = vmatpush1.bf16.msra.mxu0 %v429
    %579 = vmatprep.subr.bf16.mxu0 0
    %580 = vmatpush1.bf16.msra.mxu0 %v430
    %581 = vmatprep.subr.bf16.mxu0 0
    %582 = vmatpush1.bf16.msra.mxu0 0
    %583 = vmatprep.subr.bf16.mxu0 0
    %584 = vmatpush1.bf16.msra.mxu0 0
    %585 = vmatprep.subr.bf16.mxu0 0
    %586 = vmatpush1.bf16.msra.mxu0 0
    %587 = vmatprep.subr.bf16.mxu0 0
    %588 = vmatpush1.bf16.msra.mxu0 0
    %589 = vmatprep.subr.bf16.mxu0 0
    %590 = vmatpush1.bf16.msra.mxu0 0
    %591 = vmatprep.subr.bf16.mxu0 0
    %592 = vmatpush1.bf16.msra.mxu0 0
    %593 = vmatprep.subr.bf16.mxu0 0
    %594 = vmatpush1.bf16.msra.mxu0 0
    %595 = vmatprep.subr.bf16.mxu0 0
    %596 = vmatpush1.bf16.msra.mxu0 0
    %597 = vmatprep.subr.bf16.mxu0 0
    %598 = vmatpush1.bf16.msra.mxu0 0
    %599 = vmatprep.subr.bf16.mxu0 0
    %600 = vmatpush1.bf16.msra.mxu0 0
    %601 = vmatprep.subr.bf16.mxu0 0
    %602 = vmatpush1.bf16.msra.mxu0 0
    %603 = vmatprep.subr.bf16.mxu0 0
    %604 = vmatpush1.bf16.msra.mxu0 0
    %605 = vmatprep.subr.bf16.mxu0 0
    %606 = vmatpush1.bf16.msra.mxu0 0
    %607 = vmatprep.subr.bf16.mxu0 0
    %608 = vmatpush1.bf16.msra.mxu0 0
    %609 = vmatprep.mubr.bf16.mxu0 0
    %610 = vmatmul.mubr.bf16.gmra.mrb[0].mxu0 %v495
    %v611 = vpop.f32.mrb[0].mxu0
    %v612 = vadd.f32 %v420, %v611
    %v613 = vpop.f32.mrb[0].mxu0
    %v614 = vpop.f32.mrb[0].mxu0
    %v615 = vpop.f32.mrb[0].mxu0
    %616 = vdwg.mxu0
    %v618 = vrot.slane %v532, 6
    %v620 = vadd.f32 %v179, %v618
    %v621 = vxor.u32 %v620, 2147483648
    %v622 = vmul.f32 %v621, 1.442695
    %v623 = vpow.pop %v622
    %v624 = vadd.f32 %v623, 1.0
    %v625 = vrcp.pop %v624
    %v626 = vmul.f32 1.0, %v625
    %v628 = vrot.slane %v572, 6
    %v630 = vadd.f32 %v233, %v628
    %v631 = vxor.u32 %v630, 2147483648
    %v632 = vmul.f32 %v631, 1.442695
    %v633 = vpow.pop %v632
    %v634 = vadd.f32 %v633, 1.0
    %v635 = vrcp.pop %v634
    %v636 = vmul.f32 1.0, %v635
    %v638 = vrot.slane %v612, 6
    %v640 = vmul.f32 %v626, %v638
    %v641 = vadd.f32 %v287, %v640
    %v642 = vtanh.pop %v641
    %v644 = vrot.slane %v642, 2
    %v646 = vsub.f32 %v492, %v644
    %v648 = vrot.slane %v646, 6
    %v650 = vmul.f32 %v636, %v648
    %v651 = vadd.f32 %v642, %v650
    %v652 = vpack.c.bf16 %v651, %v651
    %v654 = vrot.slane %v652, 1
    %v656 = vsel %vm321, %v654, 0
    %658 = vmatprep.subr.bf16.mxu0 0
    %659 = vmatpush1.bf16.msra.mxu0 %v317
    %660 = vmatprep.subr.bf16.mxu0 0
    %661 = vmatpush1.bf16.msra.mxu0 %v318
    %662 = vmatprep.subr.bf16.mxu0 0
    %663 = vmatpush1.bf16.msra.mxu0 0
    %664 = vmatprep.subr.bf16.mxu0 0
    %665 = vmatpush1.bf16.msra.mxu0 0
    %666 = vmatprep.subr.bf16.mxu0 0
    %667 = vmatpush1.bf16.msra.mxu0 0
    %668 = vmatprep.subr.bf16.mxu0 0
    %669 = vmatpush1.bf16.msra.mxu0 0
    %670 = vmatprep.subr.bf16.mxu0 0
    %671 = vmatpush1.bf16.msra.mxu0 0
    %672 = vmatprep.subr.bf16.mxu0 0
    %673 = vmatpush1.bf16.msra.mxu0 0
    %674 = vmatprep.subr.bf16.mxu0 0
    %675 = vmatpush1.bf16.msra.mxu0 0
    %676 = vmatprep.subr.bf16.mxu0 0
    %677 = vmatpush1.bf16.msra.mxu0 0
    %678 = vmatprep.subr.bf16.mxu0 0
    %679 = vmatpush1.bf16.msra.mxu0 0
    %680 = vmatprep.subr.bf16.mxu0 0
    %681 = vmatpush1.bf16.msra.mxu0 0
    %682 = vmatprep.subr.bf16.mxu0 0
    %683 = vmatpush1.bf16.msra.mxu0 0
    %684 = vmatprep.subr.bf16.mxu0 0
    %685 = vmatpush1.bf16.msra.mxu0 0
    %686 = vmatprep.subr.bf16.mxu0 0
    %687 = vmatpush1.bf16.msra.mxu0 0
    %688 = vmatprep.subr.bf16.mxu0 0
    %689 = vmatpush1.bf16.msra.mxu0 0
    %690 = vmatprep.mubr.bf16.mxu0 0
    %691 = vmatmul.mubr.bf16.gmra.mrb[0].mxu0 %v656
    %v692 = vpop.f32.mrb[0].mxu0
    %v693 = vadd.f32 0.0, %v692
    %v694 = vpop.f32.mrb[0].mxu0
    %v695 = vpop.f32.mrb[0].mxu0
    %v696 = vpop.f32.mrb[0].mxu0
    %697 = vdwg.mxu0
    %698 = vmatprep.subr.bf16.mxu0 0
    %699 = vmatpush1.bf16.msra.mxu0 %v373
    %700 = vmatprep.subr.bf16.mxu0 0
    %701 = vmatpush1.bf16.msra.mxu0 %v374
    %702 = vmatprep.subr.bf16.mxu0 0
    %703 = vmatpush1.bf16.msra.mxu0 0
    %704 = vmatprep.subr.bf16.mxu0 0
    %705 = vmatpush1.bf16.msra.mxu0 0
    %706 = vmatprep.subr.bf16.mxu0 0
    %707 = vmatpush1.bf16.msra.mxu0 0
    %708 = vmatprep.subr.bf16.mxu0 0
    %709 = vmatpush1.bf16.msra.mxu0 0
    %710 = vmatprep.subr.bf16.mxu0 0
    %711 = vmatpush1.bf16.msra.mxu0 0
    %712 = vmatprep.subr.bf16.mxu0 0
    %713 = vmatpush1.bf16.msra.mxu0 0
    %714 = vmatprep.subr.bf16.mxu0 0
    %715 = vmatpush1.bf16.msra.mxu0 0
    %716 = vmatprep.subr.bf16.mxu0 0
    %717 = vmatpush1.bf16.msra.mxu0 0
    %718 = vmatprep.subr.bf16.mxu0 0
    %719 = vmatpush1.bf16.msra.mxu0 0
    %720 = vmatprep.subr.bf16.mxu0 0
    %721 = vmatpush1.bf16.msra.mxu0 0
    %722 = vmatprep.subr.bf16.mxu0 0
    %723 = vmatpush1.bf16.msra.mxu0 0
    %724 = vmatprep.subr.bf16.mxu0 0
    %725 = vmatpush1.bf16.msra.mxu0 0
    %726 = vmatprep.subr.bf16.mxu0 0
    %727 = vmatpush1.bf16.msra.mxu0 0
    %728 = vmatprep.subr.bf16.mxu0 0
    %729 = vmatpush1.bf16.msra.mxu0 0
    %730 = vmatprep.mubr.bf16.mxu0 0
    %731 = vmatmul.mubr.bf16.gmra.mrb[0].mxu0 %v656
    %v732 = vpop.f32.mrb[0].mxu0
    %v733 = vadd.f32 0.0, %v732
    %v734 = vpop.f32.mrb[0].mxu0
    %v735 = vpop.f32.mrb[0].mxu0
    %v736 = vpop.f32.mrb[0].mxu0
    %737 = vdwg.mxu0
    %738 = vmatprep.subr.bf16.mxu0 0
    %739 = vmatpush1.bf16.msra.mxu0 %v429
    %740 = vmatprep.subr.bf16.mxu0 0
    %741 = vmatpush1.bf16.msra.mxu0 %v430
    %742 = vmatprep.subr.bf16.mxu0 0
    %743 = vmatpush1.bf16.msra.mxu0 0
    %744 = vmatprep.subr.bf16.mxu0 0
    %745 = vmatpush1.bf16.msra.mxu0 0
    %746 = vmatprep.subr.bf16.mxu0 0
    %747 = vmatpush1.bf16.msra.mxu0 0
    %748 = vmatprep.subr.bf16.mxu0 0
    %749 = vmatpush1.bf16.msra.mxu0 0
    %750 = vmatprep.subr.bf16.mxu0 0
    %751 = vmatpush1.bf16.msra.mxu0 0
    %752 = vmatprep.subr.bf16.mxu0 0
    %753 = vmatpush1.bf16.msra.mxu0 0
    %754 = vmatprep.subr.bf16.mxu0 0
    %755 = vmatpush1.bf16.msra.mxu0 0
    %756 = vmatprep.subr.bf16.mxu0 0
    %757 = vmatpush1.bf16.msra.mxu0 0
    %758 = vmatprep.subr.bf16.mxu0 0
    %759 = vmatpush1.bf16.msra.mxu0 0
    %760 = vmatprep.subr.bf16.mxu0 0
    %761 = vmatpush1.bf16.msra.mxu0 0
    %762 = vmatprep.subr.bf16.mxu0 0
    %763 = vmatpush1.bf16.msra.mxu0 0
    %764 = vmatprep.subr.bf16.mxu0 0
    %765 = vmatpush1.bf16.msra.mxu0 0
    %766 = vmatprep.subr.bf16.mxu0 0
    %767 = vmatpush1.bf16.msra.mxu0 0
    %768 = vmatprep.subr.bf16.mxu0 0
    %769 = vmatpush1.bf16.msra.mxu0 0
    %770 = vmatprep.mubr.bf16.mxu0 0
    %771 = vmatmul.mubr.bf16.gmra.mrb[0].mxu0 %v656
    %v772 = vpop.f32.mrb[0].mxu0
    %v773 = vadd.f32 %v420, %v772
    %v774 = vpop.f32.mrb[0].mxu0
    %v775 = vpop.f32.mrb[0].mxu0
    %v776 = vpop.f32.mrb[0].mxu0
    %777 = vdwg.mxu0
    %v779 = vrot.slane %v693, 4
    %v781 = vadd.f32 %v179, %v779
    %v782 = vxor.u32 %v781, 2147483648
    %v783 = vmul.f32 %v782, 1.442695
    %v784 = vpow.pop %v783
    %v785 = vadd.f32 %v784, 1.0
    %v786 = vrcp.pop %v785
    %v787 = vmul.f32 1.0, %v786
    %v789 = vrot.slane %v733, 4
    %v791 = vadd.f32 %v233, %v789
    %v792 = vxor.u32 %v791, 2147483648
    %v793 = vmul.f32 %v792, 1.442695
    %v794 = vpow.pop %v793
    %v795 = vadd.f32 %v794, 1.0
    %v796 = vrcp.pop %v795
    %v797 = vmul.f32 1.0, %v796
    %v799 = vrot.slane %v773, 4
    %v801 = vmul.f32 %v787, %v799
    %v802 = vadd.f32 %v287, %v801
    %v803 = vtanh.pop %v802
    %v805 = vrot.slane %v803, 2
    %v807 = vsub.f32 %v651, %v805
    %v809 = vrot.slane %v807, 6
    %v811 = vmul.f32 %v797, %v809
    %v812 = vadd.f32 %v803, %v811
    %v813 = vpack.c.bf16 %v812, %v812
    %v815 = vrot.slane %v813, 2
    %v817 = vsel %vm321, %v815, 0
    %819 = vmatprep.subr.bf16.mxu0 0
    %820 = vmatpush1.bf16.msra.mxu0 %v317
    %821 = vmatprep.subr.bf16.mxu0 0
    %822 = vmatpush1.bf16.msra.mxu0 %v318
    %823 = vmatprep.subr.bf16.mxu0 0
    %824 = vmatpush1.bf16.msra.mxu0 0
    %825 = vmatprep.subr.bf16.mxu0 0
    %826 = vmatpush1.bf16.msra.mxu0 0
    %827 = vmatprep.subr.bf16.mxu0 0
    %828 = vmatpush1.bf16.msra.mxu0 0
    %829 = vmatprep.subr.bf16.mxu0 0
    %830 = vmatpush1.bf16.msra.mxu0 0
    %831 = vmatprep.subr.bf16.mxu0 0
    %832 = vmatpush1.bf16.msra.mxu0 0
    %833 = vmatprep.subr.bf16.mxu0 0
    %834 = vmatpush1.bf16.msra.mxu0 0
    %835 = vmatprep.subr.bf16.mxu0 0
    %836 = vmatpush1.bf16.msra.mxu0 0
    %837 = vmatprep.subr.bf16.mxu0 0
    %838 = vmatpush1.bf16.msra.mxu0 0
    %839 = vmatprep.subr.bf16.mxu0 0
    %840 = vmatpush1.bf16.msra.mxu0 0
    %841 = vmatprep.subr.bf16.mxu0 0
    %842 = vmatpush1.bf16.msra.mxu0 0
    %843 = vmatprep.subr.bf16.mxu0 0
    %844 = vmatpush1.bf16.msra.mxu0 0
    %845 = vmatprep.subr.bf16.mxu0 0
    %846 = vmatpush1.bf16.msra.mxu0 0
    %847 = vmatprep.subr.bf16.mxu0 0
    %848 = vmatpush1.bf16.msra.mxu0 0
    %849 = vmatprep.subr.bf16.mxu0 0
    %850 = vmatpush1.bf16.msra.mxu0 0
    %851 = vmatprep.mubr.bf16.mxu0 0
    %852 = vmatmul.mubr.bf16.gmra.mrb[0].mxu0 %v817
    %v853 = vpop.f32.mrb[0].mxu0
    %v854 = vadd.f32 0.0, %v853
    %v855 = vpop.f32.mrb[0].mxu0
    %v856 = vpop.f32.mrb[0].mxu0
    %v857 = vpop.f32.mrb[0].mxu0
    %858 = vdwg.mxu0
    %859 = vmatprep.subr.bf16.mxu0 0
    %860 = vmatpush1.bf16.msra.mxu0 %v373
    %861 = vmatprep.subr.bf16.mxu0 0
    %862 = vmatpush1.bf16.msra.mxu0 %v374
    %863 = vmatprep.subr.bf16.mxu0 0
    %864 = vmatpush1.bf16.msra.mxu0 0
    %865 = vmatprep.subr.bf16.mxu0 0
    %866 = vmatpush1.bf16.msra.mxu0 0
    %867 = vmatprep.subr.bf16.mxu0 0
    %868 = vmatpush1.bf16.msra.mxu0 0
    %869 = vmatprep.subr.bf16.mxu0 0
    %870 = vmatpush1.bf16.msra.mxu0 0
    %871 = vmatprep.subr.bf16.mxu0 0
    %872 = vmatpush1.bf16.msra.mxu0 0
    %873 = vmatprep.subr.bf16.mxu0 0
    %874 = vmatpush1.bf16.msra.mxu0 0
    %875 = vmatprep.subr.bf16.mxu0 0
    %876 = vmatpush1.bf16.msra.mxu0 0
    %877 = vmatprep.subr.bf16.mxu0 0
    %878 = vmatpush1.bf16.msra.mxu0 0
    %879 = vmatprep.subr.bf16.mxu0 0
    %880 = vmatpush1.bf16.msra.mxu0 0
    %881 = vmatprep.subr.bf16.mxu0 0
    %882 = vmatpush1.bf16.msra.mxu0 0
    %883 = vmatprep.subr.bf16.mxu0 0
    %884 = vmatpush1.bf16.msra.mxu0 0
    %885 = vmatprep.subr.bf16.mxu0 0
    %886 = vmatpush1.bf16.msra.mxu0 0
    %887 = vmatprep.subr.bf16.mxu0 0
    %888 = vmatpush1.bf16.msra.mxu0 0
    %889 = vmatprep.subr.bf16.mxu0 0
    %890 = vmatpush1.bf16.msra.mxu0 0
    %891 = vmatprep.mubr.bf16.mxu0 0
    %892 = vmatmul.mubr.bf16.gmra.mrb[0].mxu0 %v817
    %v893 = vpop.f32.mrb[0].mxu0
    %v894 = vadd.f32 0.0, %v893
    %v895 = vpop.f32.mrb[0].mxu0
    %v896 = vpop.f32.mrb[0].mxu0
    %v897 = vpop.f32.mrb[0].mxu0
    %898 = vdwg.mxu0
    %899 = vmatprep.subr.bf16.mxu0 0
    %900 = vmatpush1.bf16.msra.mxu0 %v429
    %901 = vmatprep.subr.bf16.mxu0 0
    %902 = vmatpush1.bf16.msra.mxu0 %v430
    %903 = vmatprep.subr.bf16.mxu0 0
    %904 = vmatpush1.bf16.msra.mxu0 0
    %905 = vmatprep.subr.bf16.mxu0 0
    %906 = vmatpush1.bf16.msra.mxu0 0
    %907 = vmatprep.subr.bf16.mxu0 0
    %908 = vmatpush1.bf16.msra.mxu0 0
    %909 = vmatprep.subr.bf16.mxu0 0
    %910 = vmatpush1.bf16.msra.mxu0 0
    %911 = vmatprep.subr.bf16.mxu0 0
    %912 = vmatpush1.bf16.msra.mxu0 0
    %913 = vmatprep.subr.bf16.mxu0 0
    %914 = vmatpush1.bf16.msra.mxu0 0
    %915 = vmatprep.subr.bf16.mxu0 0
    %916 = vmatpush1.bf16.msra.mxu0 0
    %917 = vmatprep.subr.bf16.mxu0 0
    %918 = vmatpush1.bf16.msra.mxu0 0
    %919 = vmatprep.subr.bf16.mxu0 0
    %920 = vmatpush1.bf16.msra.mxu0 0
    %921 = vmatprep.subr.bf16.mxu0 0
    %922 = vmatpush1.bf16.msra.mxu0 0
    %923 = vmatprep.subr.bf16.mxu0 0
    %924 = vmatpush1.bf16.msra.mxu0 0
    %925 = vmatprep.subr.bf16.mxu0 0
    %926 = vmatpush1.bf16.msra.mxu0 0
    %927 = vmatprep.subr.bf16.mxu0 0
    %928 = vmatpush1.bf16.msra.mxu0 0
    %929 = vmatprep.subr.bf16.mxu0 0
    %930 = vmatpush1.bf16.msra.mxu0 0
    %931 = vmatprep.mubr.bf16.mxu0 0
    %932 = vmatmul.mubr.bf16.gmra.mrb[0].mxu0 %v817
    %v933 = vpop.f32.mrb[0].mxu0
    %v934 = vadd.f32 %v420, %v933
    %v935 = vpop.f32.mrb[0].mxu0
    %v936 = vpop.f32.mrb[0].mxu0
    %v937 = vpop.f32.mrb[0].mxu0
    %938 = vdwg.mxu0
    %v940 = vrot.slane %v854, 2
    %v942 = vadd.f32 %v179, %v940
    %v943 = vxor.u32 %v942, 2147483648
    %v944 = vmul.f32 %v943, 1.442695
    %v945 = vpow.pop %v944
    %v946 = vadd.f32 %v945, 1.0
    %v947 = vrcp.pop %v946
    %v948 = vmul.f32 1.0, %v947
    %v950 = vrot.slane %v894, 2
    %v952 = vadd.f32 %v233, %v950
    %v953 = vxor.u32 %v952, 2147483648
    %v954 = vmul.f32 %v953, 1.442695
    %v955 = vpow.pop %v954
    %v956 = vadd.f32 %v955, 1.0
    %v957 = vrcp.pop %v956
    %v958 = vmul.f32 1.0, %v957
    %v960 = vrot.slane %v934, 2
    %v962 = vmul.f32 %v948, %v960
    %v963 = vadd.f32 %v287, %v962
    %v964 = vtanh.pop %v963
    %v966 = vrot.slane %v964, 2
    %v968 = vsub.f32 %v812, %v966
    %v970 = vrot.slane %v968, 6
    %v972 = vmul.f32 %v958, %v970
    %v973 = vadd.f32 %v964, %v972
    %v974 = vpack.c.bf16 %v973, %v973
    %v976 = vrot.slane %v974, 3
    %v978 = vsel %vm321, %v976, 0
    %980 = vmatprep.subr.bf16.mxu0 0
    %981 = vmatpush1.bf16.msra.mxu0 %v317
    %982 = vmatprep.subr.bf16.mxu0 0
    %983 = vmatpush1.bf16.msra.mxu0 %v318
    %984 = vmatprep.subr.bf16.mxu0 0
    %985 = vmatpush1.bf16.msra.mxu0 0
    %986 = vmatprep.subr.bf16.mxu0 0
    %987 = vmatpush1.bf16.msra.mxu0 0
    %988 = vmatprep.subr.bf16.mxu0 0
    %989 = vmatpush1.bf16.msra.mxu0 0
    %990 = vmatprep.subr.bf16.mxu0 0
    %991 = vmatpush1.bf16.msra.mxu0 0
    %992 = vmatprep.subr.bf16.mxu0 0
    %993 = vmatpush1.bf16.msra.mxu0 0
    %994 = vmatprep.subr.bf16.mxu0 0
    %995 = vmatpush1.bf16.msra.mxu0 0
    %996 = vmatprep.subr.bf16.mxu0 0
    %997 = vmatpush1.bf16.msra.mxu0 0
    %998 = vmatprep.subr.bf16.mxu0 0
    %999 = vmatpush1.bf16.msra.mxu0 0
    %1000 = vmatprep.subr.bf16.mxu0 0
    %1001 = vmatpush1.bf16.msra.mxu0 0
    %1002 = vmatprep.subr.bf16.mxu0 0
    %1003 = vmatpush1.bf16.msra.mxu0 0
    %1004 = vmatprep.subr.bf16.mxu0 0
    %1005 = vmatpush1.bf16.msra.mxu0 0
    %1006 = vmatprep.subr.bf16.mxu0 0
    %1007 = vmatpush1.bf16.msra.mxu0 0
    %1008 = vmatprep.subr.bf16.mxu0 0
    %1009 = vmatpush1.bf16.msra.mxu0 0
    %1010 = vmatprep.subr.bf16.mxu0 0
    %1011 = vmatpush1.bf16.msra.mxu0 0
    %1012 = vmatprep.mubr.bf16.mxu0 0
    %1013 = vmatmul.mubr.bf16.gmra.mrb[0].mxu0 %v978
    %v1014 = vpop.f32.mrb[0].mxu0
    %v1015 = vadd.f32 0.0, %v1014
    %v1016 = vpop.f32.mrb[0].mxu0
    %v1017 = vpop.f32.mrb[0].mxu0
    %v1018 = vpop.f32.mrb[0].mxu0
    %1019 = vdwg.mxu0
    %1020 = vmatprep.subr.bf16.mxu0 0
    %1021 = vmatpush1.bf16.msra.mxu0 %v373
    %1022 = vmatprep.subr.bf16.mxu0 0
    %1023 = vmatpush1.bf16.msra.mxu0 %v374
    %1024 = vmatprep.subr.bf16.mxu0 0
    %1025 = vmatpush1.bf16.msra.mxu0 0
    %1026 = vmatprep.subr.bf16.mxu0 0
    %1027 = vmatpush1.bf16.msra.mxu0 0
    %1028 = vmatprep.subr.bf16.mxu0 0
    %1029 = vmatpush1.bf16.msra.mxu0 0
    %1030 = vmatprep.subr.bf16.mxu0 0
    %1031 = vmatpush1.bf16.msra.mxu0 0
    %1032 = vmatprep.subr.bf16.mxu0 0
    %1033 = vmatpush1.bf16.msra.mxu0 0
    %1034 = vmatprep.subr.bf16.mxu0 0
    %1035 = vmatpush1.bf16.msra.mxu0 0
    %1036 = vmatprep.subr.bf16.mxu0 0
    %1037 = vmatpush1.bf16.msra.mxu0 0
    %1038 = vmatprep.subr.bf16.mxu0 0
    %1039 = vmatpush1.bf16.msra.mxu0 0
    %1040 = vmatprep.subr.bf16.mxu0 0
    %1041 = vmatpush1.bf16.msra.mxu0 0
    %1042 = vmatprep.subr.bf16.mxu0 0
    %1043 = vmatpush1.bf16.msra.mxu0 0
    %1044 = vmatprep.subr.bf16.mxu0 0
    %1045 = vmatpush1.bf16.msra.mxu0 0
    %1046 = vmatprep.subr.bf16.mxu0 0
    %1047 = vmatpush1.bf16.msra.mxu0 0
    %1048 = vmatprep.subr.bf16.mxu0 0
    %1049 = vmatpush1.bf16.msra.mxu0 0
    %1050 = vmatprep.subr.bf16.mxu0 0
    %1051 = vmatpush1.bf16.msra.mxu0 0
    %1052 = vmatprep.mubr.bf16.mxu0 0
    %1053 = vmatmul.mubr.bf16.gmra.mrb[0].mxu0 %v978
    %v1054 = vpop.f32.mrb[0].mxu0
    %v1055 = vadd.f32 0.0, %v1054
    %v1056 = vpop.f32.mrb[0].mxu0
    %v1057 = vpop.f32.mrb[0].mxu0
    %v1058 = vpop.f32.mrb[0].mxu0
    %1059 = vdwg.mxu0
    %1060 = vmatprep.subr.bf16.mxu0 0
    %1061 = vmatpush1.bf16.msra.mxu0 %v429
    %1062 = vmatprep.subr.bf16.mxu0 0
    %1063 = vmatpush1.bf16.msra.mxu0 %v430
    %1064 = vmatprep.subr.bf16.mxu0 0
    %1065 = vmatpush1.bf16.msra.mxu0 0
    %1066 = vmatprep.subr.bf16.mxu0 0
    %1067 = vmatpush1.bf16.msra.mxu0 0
    %1068 = vmatprep.subr.bf16.mxu0 0
    %1069 = vmatpush1.bf16.msra.mxu0 0
    %1070 = vmatprep.subr.bf16.mxu0 0
    %1071 = vmatpush1.bf16.msra.mxu0 0
    %1072 = vmatprep.subr.bf16.mxu0 0
    %1073 = vmatpush1.bf16.msra.mxu0 0
    %1074 = vmatprep.subr.bf16.mxu0 0
    %1075 = vmatpush1.bf16.msra.mxu0 0
    %1076 = vmatprep.subr.bf16.mxu0 0
    %1077 = vmatpush1.bf16.msra.mxu0 0
    %1078 = vmatprep.subr.bf16.mxu0 0
    %1079 = vmatpush1.bf16.msra.mxu0 0
    %1080 = vmatprep.subr.bf16.mxu0 0
    %1081 = vmatpush1.bf16.msra.mxu0 0
    %1082 = vmatprep.subr.bf16.mxu0 0
    %1083 = vmatpush1.bf16.msra.mxu0 0
    %1084 = vmatprep.subr.bf16.mxu0 0
    %1085 = vmatpush1.bf16.msra.mxu0 0
    %1086 = vmatprep.subr.bf16.mxu0 0
    %1087 = vmatpush1.bf16.msra.mxu0 0
    %1088 = vmatprep.subr.bf16.mxu0 0
    %1089 = vmatpush1.bf16.msra.mxu0 0
    %1090 = vmatprep.subr.bf16.mxu0 0
    %1091 = vmatpush1.bf16.msra.mxu0 0
    %1092 = vmatprep.mubr.bf16.mxu0 0
    %1093 = vmatmul.mubr.bf16.gmra.mrb[0].mxu0 %v978
    %v1094 = vpop.f32.mrb[0].mxu0
    %v1095 = vadd.f32 %v420, %v1094
    %v1096 = vpop.f32.mrb[0].mxu0
    %v1097 = vpop.f32.mrb[0].mxu0
    %v1098 = vpop.f32.mrb[0].mxu0
    %1099 = vdwg.mxu0
    %v1100 = vadd.f32 %v182, %v1015
    %v1101 = vxor.u32 %v1100, 2147483648
    %v1102 = vmul.f32 %v1101, 1.442695
    %v1103 = vpow.pop %v1102
    %v1104 = vadd.f32 %v1103, 1.0
    %v1105 = vrcp.pop %v1104
    %v1106 = vmul.f32 1.0, %v1105
    %v1107 = vadd.f32 %v236, %v1055
    %v1108 = vxor.u32 %v1107, 2147483648
    %v1109 = vmul.f32 %v1108, 1.442695
    %v1110 = vpow.pop %v1109
    %v1111 = vadd.f32 %v1110, 1.0
    %v1112 = vrcp.pop %v1111
    %v1113 = vmul.f32 1.0, %v1112
    %v1114 = vmul.f32 %v1106, %v1095
    %v1115 = vadd.f32 %v290, %v1114
    %v1116 = vtanh.pop %v1115
    %v1118 = vrot.slane %v1116, 2
    %v1120 = vsub.f32 %v973, %v1118
    %v1122 = vrot.slane %v1120, 6
    %v1124 = vmul.f32 %v1113, %v1122
    %v1125 = vadd.f32 %v1116, %v1124
    %v1126 = vpack.c.bf16 %v1125, %v1125
    %v1128 = vsel %vm321, %v1126, 0
    %1130 = vmatprep.subr.bf16.mxu0 0
    %1131 = vmatpush1.bf16.msra.mxu0 %v317
    %1132 = vmatprep.subr.bf16.mxu0 0
    %1133 = vmatpush1.bf16.msra.mxu0 %v318
    %1134 = vmatprep.subr.bf16.mxu0 0
    %1135 = vmatpush1.bf16.msra.mxu0 0
    %1136 = vmatprep.subr.bf16.mxu0 0
    %1137 = vmatpush1.bf16.msra.mxu0 0
    %1138 = vmatprep.subr.bf16.mxu0 0
    %1139 = vmatpush1.bf16.msra.mxu0 0
    %1140 = vmatprep.subr.bf16.mxu0 0
    %1141 = vmatpush1.bf16.msra.mxu0 0
    %1142 = vmatprep.subr.bf16.mxu0 0
    %1143 = vmatpush1.bf16.msra.mxu0 0
    %1144 = vmatprep.subr.bf16.mxu0 0
    %1145 = vmatpush1.bf16.msra.mxu0 0
    %1146 = vmatprep.subr.bf16.mxu0 0
    %1147 = vmatpush1.bf16.msra.mxu0 0
    %1148 = vmatprep.subr.bf16.mxu0 0
    %1149 = vmatpush1.bf16.msra.mxu0 0
    %1150 = vmatprep.subr.bf16.mxu0 0
    %1151 = vmatpush1.bf16.msra.mxu0 0
    %1152 = vmatprep.subr.bf16.mxu0 0
    %1153 = vmatpush1.bf16.msra.mxu0 0
    %1154 = vmatprep.subr.bf16.mxu0 0
    %1155 = vmatpush1.bf16.msra.mxu0 0
    %1156 = vmatprep.subr.bf16.mxu0 0
    %1157 = vmatpush1.bf16.msra.mxu0 0
    %1158 = vmatprep.subr.bf16.mxu0 0
    %1159 = vmatpush1.bf16.msra.mxu0 0
    %1160 = vmatprep.subr.bf16.mxu0 0
    %1161 = vmatpush1.bf16.msra.mxu0 0
    %1162 = vmatprep.mubr.bf16.mxu0 0
    %1163 = vmatmul.mubr.bf16.gmra.mrb[0].mxu0 %v1128
    %v1164 = vpop.f32.mrb[0].mxu0
    %v1165 = vadd.f32 0.0, %v1164
    %v1166 = vpop.f32.mrb[0].mxu0
    %v1167 = vpop.f32.mrb[0].mxu0
    %v1168 = vpop.f32.mrb[0].mxu0
    %1169 = vdwg.mxu0
    %1170 = vmatprep.subr.bf16.mxu0 0
    %1171 = vmatpush1.bf16.msra.mxu0 %v373
    %1172 = vmatprep.subr.bf16.mxu0 0
    %1173 = vmatpush1.bf16.msra.mxu0 %v374
    %1174 = vmatprep.subr.bf16.mxu0 0
    %1175 = vmatpush1.bf16.msra.mxu0 0
    %1176 = vmatprep.subr.bf16.mxu0 0
    %1177 = vmatpush1.bf16.msra.mxu0 0
    %1178 = vmatprep.subr.bf16.mxu0 0
    %1179 = vmatpush1.bf16.msra.mxu0 0
    %1180 = vmatprep.subr.bf16.mxu0 0
    %1181 = vmatpush1.bf16.msra.mxu0 0
    %1182 = vmatprep.subr.bf16.mxu0 0
    %1183 = vmatpush1.bf16.msra.mxu0 0
    %1184 = vmatprep.subr.bf16.mxu0 0
    %1185 = vmatpush1.bf16.msra.mxu0 0
    %1186 = vmatprep.subr.bf16.mxu0 0
    %1187 = vmatpush1.bf16.msra.mxu0 0
    %1188 = vmatprep.subr.bf16.mxu0 0
    %1189 = vmatpush1.bf16.msra.mxu0 0
    %1190 = vmatprep.subr.bf16.mxu0 0
    %1191 = vmatpush1.bf16.msra.mxu0 0
    %1192 = vmatprep.subr.bf16.mxu0 0
    %1193 = vmatpush1.bf16.msra.mxu0 0
    %1194 = vmatprep.subr.bf16.mxu0 0
    %1195 = vmatpush1.bf16.msra.mxu0 0
    %1196 = vmatprep.subr.bf16.mxu0 0
    %1197 = vmatpush1.bf16.msra.mxu0 0
    %1198 = vmatprep.subr.bf16.mxu0 0
    %1199 = vmatpush1.bf16.msra.mxu0 0
    %1200 = vmatprep.subr.bf16.mxu0 0
    %1201 = vmatpush1.bf16.msra.mxu0 0
    %1202 = vmatprep.mubr.bf16.mxu0 0
    %1203 = vmatmul.mubr.bf16.gmra.mrb[0].mxu0 %v1128
    %v1204 = vpop.f32.mrb[0].mxu0
    %v1205 = vadd.f32 0.0, %v1204
    %v1206 = vpop.f32.mrb[0].mxu0
    %v1207 = vpop.f32.mrb[0].mxu0
    %v1208 = vpop.f32.mrb[0].mxu0
    %1209 = vdwg.mxu0
    %1210 = vmatprep.subr.bf16.mxu0 0
    %1211 = vmatpush1.bf16.msra.mxu0 %v429
    %1212 = vmatprep.subr.bf16.mxu0 0
    %1213 = vmatpush1.bf16.msra.mxu0 %v430
    %1214 = vmatprep.subr.bf16.mxu0 0
    %1215 = vmatpush1.bf16.msra.mxu0 0
    %1216 = vmatprep.subr.bf16.mxu0 0
    %1217 = vmatpush1.bf16.msra.mxu0 0
    %1218 = vmatprep.subr.bf16.mxu0 0
    %1219 = vmatpush1.bf16.msra.mxu0 0
    %1220 = vmatprep.subr.bf16.mxu0 0
    %1221 = vmatpush1.bf16.msra.mxu0 0
    %1222 = vmatprep.subr.bf16.mxu0 0
    %1223 = vmatpush1.bf16.msra.mxu0 0
    %1224 = vmatprep.subr.bf16.mxu0 0
    %1225 = vmatpush1.bf16.msra.mxu0 0
    %1226 = vmatprep.subr.bf16.mxu0 0
    %1227 = vmatpush1.bf16.msra.mxu0 0
    %1228 = vmatprep.subr.bf16.mxu0 0
    %1229 = vmatpush1.bf16.msra.mxu0 0
    %1230 = vmatprep.subr.bf16.mxu0 0
    %1231 = vmatpush1.bf16.msra.mxu0 0
    %1232 = vmatprep.subr.bf16.mxu0 0
    %1233 = vmatpush1.bf16.msra.mxu0 0
    %1234 = vmatprep.subr.bf16.mxu0 0
    %1235 = vmatpush1.bf16.msra.mxu0 0
    %1236 = vmatprep.subr.bf16.mxu0 0
    %1237 = vmatpush1.bf16.msra.mxu0 0
    %1238 = vmatprep.subr.bf16.mxu0 0
    %1239 = vmatpush1.bf16.msra.mxu0 0
    %1240 = vmatprep.subr.bf16.mxu0 0
    %1241 = vmatpush1.bf16.msra.mxu0 0
    %1242 = vmatprep.mubr.bf16.mxu0 0
    %1243 = vmatmul.mubr.bf16.gmra.mrb[0].mxu0 %v1128
    %v1244 = vpop.f32.mrb[0].mxu0
    %v1245 = vadd.f32 %v420, %v1244
    %v1246 = vpop.f32.mrb[0].mxu0
    %v1247 = vpop.f32.mrb[0].mxu0
    %v1248 = vpop.f32.mrb[0].mxu0
    %1249 = vdwg.mxu0
    %v1251 = vrot.slane %v1165, 6
    %v1253 = vadd.f32 %v182, %v1251
    %v1254 = vxor.u32 %v1253, 2147483648
    %v1255 = vmul.f32 %v1254, 1.442695
    %v1256 = vpow.pop %v1255
    %v1257 = vadd.f32 %v1256, 1.0
    %v1258 = vrcp.pop %v1257
    %v1259 = vmul.f32 1.0, %v1258
    %v1261 = vrot.slane %v1205, 6
    %v1263 = vadd.f32 %v236, %v1261
    %v1264 = vxor.u32 %v1263, 2147483648
    %v1265 = vmul.f32 %v1264, 1.442695
    %v1266 = vpow.pop %v1265
    %v1267 = vadd.f32 %v1266, 1.0
    %v1268 = vrcp.pop %v1267
    %v1269 = vmul.f32 1.0, %v1268
    %v1271 = vrot.slane %v1245, 6
    %v1273 = vmul.f32 %v1259, %v1271
    %v1274 = vadd.f32 %v290, %v1273
    %v1275 = vtanh.pop %v1274
    %v1277 = vrot.slane %v1275, 2
    %v1279 = vsub.f32 %v1125, %v1277
    %v1281 = vrot.slane %v1279, 6
    %v1283 = vmul.f32 %v1269, %v1281
    %v1284 = vadd.f32 %v1275, %v1283
    %v1285 = vpack.c.bf16 %v1284, %v1284
    %v1287 = vrot.slane %v1285, 1
    %v1289 = vsel %vm321, %v1287, 0
    %1291 = vmatprep.subr.bf16.mxu0 0
    %1292 = vmatpush1.bf16.msra.mxu0 %v317
    %1293 = vmatprep.subr.bf16.mxu0 0
    %1294 = vmatpush1.bf16.msra.mxu0 %v318
    %1295 = vmatprep.subr.bf16.mxu0 0
    %1296 = vmatpush1.bf16.msra.mxu0 0
    %1297 = vmatprep.subr.bf16.mxu0 0
    %1298 = vmatpush1.bf16.msra.mxu0 0
    %1299 = vmatprep.subr.bf16.mxu0 0
    %1300 = vmatpush1.bf16.msra.mxu0 0
    %1301 = vmatprep.subr.bf16.mxu0 0
    %1302 = vmatpush1.bf16.msra.mxu0 0
    %1303 = vmatprep.subr.bf16.mxu0 0
    %1304 = vmatpush1.bf16.msra.mxu0 0
    %1305 = vmatprep.subr.bf16.mxu0 0
    %1306 = vmatpush1.bf16.msra.mxu0 0
    %1307 = vmatprep.subr.bf16.mxu0 0
    %1308 = vmatpush1.bf16.msra.mxu0 0
    %1309 = vmatprep.subr.bf16.mxu0 0
    %1310 = vmatpush1.bf16.msra.mxu0 0
    %1311 = vmatprep.subr.bf16.mxu0 0
    %1312 = vmatpush1.bf16.msra.mxu0 0
    %1313 = vmatprep.subr.bf16.mxu0 0
    %1314 = vmatpush1.bf16.msra.mxu0 0
    %1315 = vmatprep.subr.bf16.mxu0 0
    %1316 = vmatpush1.bf16.msra.mxu0 0
    %1317 = vmatprep.subr.bf16.mxu0 0
    %1318 = vmatpush1.bf16.msra.mxu0 0
    %1319 = vmatprep.subr.bf16.mxu0 0
    %1320 = vmatpush1.bf16.msra.mxu0 0
    %1321 = vmatprep.subr.bf16.mxu0 0
    %1322 = vmatpush1.bf16.msra.mxu0 0
    %1323 = vmatprep.mubr.bf16.mxu0 0
    %1324 = vmatmul.mubr.bf16.gmra.mrb[0].mxu0 %v1289
    %v1325 = vpop.f32.mrb[0].mxu0
    %v1326 = vadd.f32 0.0, %v1325
    %v1327 = vpop.f32.mrb[0].mxu0
    %v1328 = vpop.f32.mrb[0].mxu0
    %v1329 = vpop.f32.mrb[0].mxu0
    %1330 = vdwg.mxu0
    %1331 = vmatprep.subr.bf16.mxu0 0
    %1332 = vmatpush1.bf16.msra.mxu0 %v373
    %1333 = vmatprep.subr.bf16.mxu0 0
    %1334 = vmatpush1.bf16.msra.mxu0 %v374
    %1335 = vmatprep.subr.bf16.mxu0 0
    %1336 = vmatpush1.bf16.msra.mxu0 0
    %1337 = vmatprep.subr.bf16.mxu0 0
    %1338 = vmatpush1.bf16.msra.mxu0 0
    %1339 = vmatprep.subr.bf16.mxu0 0
    %1340 = vmatpush1.bf16.msra.mxu0 0
    %1341 = vmatprep.subr.bf16.mxu0 0
    %1342 = vmatpush1.bf16.msra.mxu0 0
    %1343 = vmatprep.subr.bf16.mxu0 0
    %1344 = vmatpush1.bf16.msra.mxu0 0
    %1345 = vmatprep.subr.bf16.mxu0 0
    %1346 = vmatpush1.bf16.msra.mxu0 0
    %1347 = vmatprep.subr.bf16.mxu0 0
    %1348 = vmatpush1.bf16.msra.mxu0 0
    %1349 = vmatprep.subr.bf16.mxu0 0
    %1350 = vmatpush1.bf16.msra.mxu0 0
    %1351 = vmatprep.subr.bf16.mxu0 0
    %1352 = vmatpush1.bf16.msra.mxu0 0
    %1353 = vmatprep.subr.bf16.mxu0 0
    %1354 = vmatpush1.bf16.msra.mxu0 0
    %1355 = vmatprep.subr.bf16.mxu0 0
    %1356 = vmatpush1.bf16.msra.mxu0 0
    %1357 = vmatprep.subr.bf16.mxu0 0
    %1358 = vmatpush1.bf16.msra.mxu0 0
    %1359 = vmatprep.subr.bf16.mxu0 0
    %1360 = vmatpush1.bf16.msra.mxu0 0
    %1361 = vmatprep.subr.bf16.mxu0 0
    %1362 = vmatpush1.bf16.msra.mxu0 0
    %1363 = vmatprep.mubr.bf16.mxu0 0
    %1364 = vmatmul.mubr.bf16.gmra.mrb[0].mxu0 %v1289
    %v1365 = vpop.f32.mrb[0].mxu0
    %v1366 = vadd.f32 0.0, %v1365
    %v1367 = vpop.f32.mrb[0].mxu0
    %v1368 = vpop.f32.mrb[0].mxu0
    %v1369 = vpop.f32.mrb[0].mxu0
    %1370 = vdwg.mxu0
    %1371 = vmatprep.subr.bf16.mxu0 0
    %1372 = vmatpush1.bf16.msra.mxu0 %v429
    %1373 = vmatprep.subr.bf16.mxu0 0
    %1374 = vmatpush1.bf16.msra.mxu0 %v430
    %1375 = vmatprep.subr.bf16.mxu0 0
    %1376 = vmatpush1.bf16.msra.mxu0 0
    %1377 = vmatprep.subr.bf16.mxu0 0
    %1378 = vmatpush1.bf16.msra.mxu0 0
    %1379 = vmatprep.subr.bf16.mxu0 0
    %1380 = vmatpush1.bf16.msra.mxu0 0
    %1381 = vmatprep.subr.bf16.mxu0 0
    %1382 = vmatpush1.bf16.msra.mxu0 0
    %1383 = vmatprep.subr.bf16.mxu0 0
    %1384 = vmatpush1.bf16.msra.mxu0 0
    %1385 = vmatprep.subr.bf16.mxu0 0
    %1386 = vmatpush1.bf16.msra.mxu0 0
    %1387 = vmatprep.subr.bf16.mxu0 0
    %1388 = vmatpush1.bf16.msra.mxu0 0
    %1389 = vmatprep.subr.bf16.mxu0 0
    %1390 = vmatpush1.bf16.msra.mxu0 0
    %1391 = vmatprep.subr.bf16.mxu0 0
    %1392 = vmatpush1.bf16.msra.mxu0 0
    %1393 = vmatprep.subr.bf16.mxu0 0
    %1394 = vmatpush1.bf16.msra.mxu0 0
    %1395 = vmatprep.subr.bf16.mxu0 0
    %1396 = vmatpush1.bf16.msra.mxu0 0
    %1397 = vmatprep.subr.bf16.mxu0 0
    %1398 = vmatpush1.bf16.msra.mxu0 0
    %1399 = vmatprep.subr.bf16.mxu0 0
    %1400 = vmatpush1.bf16.msra.mxu0 0
    %1401 = vmatprep.subr.bf16.mxu0 0
    %1402 = vmatpush1.bf16.msra.mxu0 0
    %1403 = vmatprep.mubr.bf16.mxu0 0
    %1404 = vmatmul.mubr.bf16.gmra.mrb[0].mxu0 %v1289
    %v1405 = vpop.f32.mrb[0].mxu0
    %v1406 = vadd.f32 %v420, %v1405
    %v1407 = vpop.f32.mrb[0].mxu0
    %v1408 = vpop.f32.mrb[0].mxu0
    %v1409 = vpop.f32.mrb[0].mxu0
    %1410 = vdwg.mxu0
    %v1412 = vrot.slane %v1326, 4
    %v1414 = vadd.f32 %v182, %v1412
    %v1415 = vxor.u32 %v1414, 2147483648
    %v1416 = vmul.f32 %v1415, 1.442695
    %v1417 = vpow.pop %v1416
    %v1418 = vadd.f32 %v1417, 1.0
    %v1419 = vrcp.pop %v1418
    %v1420 = vmul.f32 1.0, %v1419
    %v1422 = vrot.slane %v1366, 4
    %v1424 = vadd.f32 %v236, %v1422
    %v1425 = vxor.u32 %v1424, 2147483648
    %v1426 = vmul.f32 %v1425, 1.442695
    %v1427 = vpow.pop %v1426
    %v1428 = vadd.f32 %v1427, 1.0
    %v1429 = vrcp.pop %v1428
    %v1430 = vmul.f32 1.0, %v1429
    %v1432 = vrot.slane %v1406, 4
    %v1434 = vmul.f32 %v1420, %v1432
    %v1435 = vadd.f32 %v290, %v1434
    %v1436 = vtanh.pop %v1435
    %v1438 = vrot.slane %v1436, 2
    %v1440 = vsub.f32 %v1284, %v1438
    %v1442 = vrot.slane %v1440, 6
    %v1444 = vmul.f32 %v1430, %v1442
    %v1445 = vadd.f32 %v1436, %v1444
    %v1446 = vpack.c.bf16 %v1445, %v1445
    %v1448 = vrot.slane %v1446, 2
    %v1450 = vsel %vm321, %v1448, 0
    %1452 = vmatprep.subr.bf16.mxu0 0
    %1453 = vmatpush1.bf16.msra.mxu0 %v317
    %1454 = vmatprep.subr.bf16.mxu0 0
    %1455 = vmatpush1.bf16.msra.mxu0 %v318
    %1456 = vmatprep.subr.bf16.mxu0 0
    %1457 = vmatpush1.bf16.msra.mxu0 0
    %1458 = vmatprep.subr.bf16.mxu0 0
    %1459 = vmatpush1.bf16.msra.mxu0 0
    %1460 = vmatprep.subr.bf16.mxu0 0
    %1461 = vmatpush1.bf16.msra.mxu0 0
    %1462 = vmatprep.subr.bf16.mxu0 0
    %1463 = vmatpush1.bf16.msra.mxu0 0
    %1464 = vmatprep.subr.bf16.mxu0 0
    %1465 = vmatpush1.bf16.msra.mxu0 0
    %1466 = vmatprep.subr.bf16.mxu0 0
    %1467 = vmatpush1.bf16.msra.mxu0 0
    %1468 = vmatprep.subr.bf16.mxu0 0
    %1469 = vmatpush1.bf16.msra.mxu0 0
    %1470 = vmatprep.subr.bf16.mxu0 0
    %1471 = vmatpush1.bf16.msra.mxu0 0
    %1472 = vmatprep.subr.bf16.mxu0 0
    %1473 = vmatpush1.bf16.msra.mxu0 0
    %1474 = vmatprep.subr.bf16.mxu0 0
    %1475 = vmatpush1.bf16.msra.mxu0 0
    %1476 = vmatprep.subr.bf16.mxu0 0
    %1477 = vmatpush1.bf16.msra.mxu0 0
    %1478 = vmatprep.subr.bf16.mxu0 0
    %1479 = vmatpush1.bf16.msra.mxu0 0
    %1480 = vmatprep.subr.bf16.mxu0 0
    %1481 = vmatpush1.bf16.msra.mxu0 0
    %1482 = vmatprep.subr.bf16.mxu0 0
    %1483 = vmatpush1.bf16.msra.mxu0 0
    %1484 = vmatprep.mubr.bf16.mxu0 0
    %1485 = vmatmul.mubr.bf16.gmra.mrb[0].mxu0 %v1450
    %v1486 = vpop.f32.mrb[0].mxu0
    %v1487 = vadd.f32 0.0, %v1486
    %v1488 = vpop.f32.mrb[0].mxu0
    %v1489 = vpop.f32.mrb[0].mxu0
    %v1490 = vpop.f32.mrb[0].mxu0
    %1491 = vdwg.mxu0
    %1492 = vmatprep.subr.bf16.mxu0 0
    %1493 = vmatpush1.bf16.msra.mxu0 %v373
    %1494 = vmatprep.subr.bf16.mxu0 0
    %1495 = vmatpush1.bf16.msra.mxu0 %v374
    %1496 = vmatprep.subr.bf16.mxu0 0
    %1497 = vmatpush1.bf16.msra.mxu0 0
    %1498 = vmatprep.subr.bf16.mxu0 0
    %1499 = vmatpush1.bf16.msra.mxu0 0
    %1500 = vmatprep.subr.bf16.mxu0 0
    %1501 = vmatpush1.bf16.msra.mxu0 0
    %1502 = vmatprep.subr.bf16.mxu0 0
    %1503 = vmatpush1.bf16.msra.mxu0 0
    %1504 = vmatprep.subr.bf16.mxu0 0
    %1505 = vmatpush1.bf16.msra.mxu0 0
    %1506 = vmatprep.subr.bf16.mxu0 0
    %1507 = vmatpush1.bf16.msra.mxu0 0
    %1508 = vmatprep.subr.bf16.mxu0 0
    %1509 = vmatpush1.bf16.msra.mxu0 0
    %1510 = vmatprep.subr.bf16.mxu0 0
    %1511 = vmatpush1.bf16.msra.mxu0 0
    %1512 = vmatprep.subr.bf16.mxu0 0
    %1513 = vmatpush1.bf16.msra.mxu0 0
    %1514 = vmatprep.subr.bf16.mxu0 0
    %1515 = vmatpush1.bf16.msra.mxu0 0
    %1516 = vmatprep.subr.bf16.mxu0 0
    %1517 = vmatpush1.bf16.msra.mxu0 0
    %1518 = vmatprep.subr.bf16.mxu0 0
    %1519 = vmatpush1.bf16.msra.mxu0 0
    %1520 = vmatprep.subr.bf16.mxu0 0
    %1521 = vmatpush1.bf16.msra.mxu0 0
    %1522 = vmatprep.subr.bf16.mxu0 0
    %1523 = vmatpush1.bf16.msra.mxu0 0
    %1524 = vmatprep.mubr.bf16.mxu0 0
    %1525 = vmatmul.mubr.bf16.gmra.mrb[0].mxu0 %v1450
    %v1526 = vpop.f32.mrb[0].mxu0
    %v1527 = vadd.f32 0.0, %v1526
    %v1528 = vpop.f32.mrb[0].mxu0
    %v1529 = vpop.f32.mrb[0].mxu0
    %v1530 = vpop.f32.mrb[0].mxu0
    %1531 = vdwg.mxu0
    %1532 = vmatprep.subr.bf16.mxu0 0
    %1533 = vmatpush1.bf16.msra.mxu0 %v429
    %1534 = vmatprep.subr.bf16.mxu0 0
    %1535 = vmatpush1.bf16.msra.mxu0 %v430
    %1536 = vmatprep.subr.bf16.mxu0 0
    %1537 = vmatpush1.bf16.msra.mxu0 0
    %1538 = vmatprep.subr.bf16.mxu0 0
    %1539 = vmatpush1.bf16.msra.mxu0 0
    %1540 = vmatprep.subr.bf16.mxu0 0
    %1541 = vmatpush1.bf16.msra.mxu0 0
    %1542 = vmatprep.subr.bf16.mxu0 0
    %1543 = vmatpush1.bf16.msra.mxu0 0
    %1544 = vmatprep.subr.bf16.mxu0 0
    %1545 = vmatpush1.bf16.msra.mxu0 0
    %1546 = vmatprep.subr.bf16.mxu0 0
    %1547 = vmatpush1.bf16.msra.mxu0 0
    %1548 = vmatprep.subr.bf16.mxu0 0
    %1549 = vmatpush1.bf16.msra.mxu0 0
    %1550 = vmatprep.subr.bf16.mxu0 0
    %1551 = vmatpush1.bf16.msra.mxu0 0
    %1552 = vmatprep.subr.bf16.mxu0 0
    %1553 = vmatpush1.bf16.msra.mxu0 0
    %1554 = vmatprep.subr.bf16.mxu0 0
    %1555 = vmatpush1.bf16.msra.mxu0 0
    %1556 = vmatprep.subr.bf16.mxu0 0
    %1557 = vmatpush1.bf16.msra.mxu0 0
    %1558 = vmatprep.subr.bf16.mxu0 0
    %1559 = vmatpush1.bf16.msra.mxu0 0
    %1560 = vmatprep.subr.bf16.mxu0 0
    %1561 = vmatpush1.bf16.msra.mxu0 0
    %1562 = vmatprep.subr.bf16.mxu0 0
    %1563 = vmatpush1.bf16.msra.mxu0 0
    %1564 = vmatprep.mubr.bf16.mxu0 0
    %1565 = vmatmul.mubr.bf16.gmra.mrb[0].mxu0 %v1450
    %v1566 = vpop.f32.mrb[0].mxu0
    %v1567 = vadd.f32 %v420, %v1566
    %v1568 = vpop.f32.mrb[0].mxu0
    %v1569 = vpop.f32.mrb[0].mxu0
    %v1570 = vpop.f32.mrb[0].mxu0
    %1571 = vdwg.mxu0
    %v1573 = vrot.slane %v1487, 2
    %v1575 = vadd.f32 %v182, %v1573
    %v1576 = vxor.u32 %v1575, 2147483648
    %v1577 = vmul.f32 %v1576, 1.442695
    %v1578 = vpow.pop %v1577
    %v1579 = vadd.f32 %v1578, 1.0
    %v1580 = vrcp.pop %v1579
    %v1581 = vmul.f32 1.0, %v1580
    %v1583 = vrot.slane %v1527, 2
    %v1585 = vadd.f32 %v236, %v1583
    %v1586 = vxor.u32 %v1585, 2147483648
    %v1587 = vmul.f32 %v1586, 1.442695
    %v1588 = vpow.pop %v1587
    %v1589 = vadd.f32 %v1588, 1.0
    %v1590 = vrcp.pop %v1589
    %v1591 = vmul.f32 1.0, %v1590
    %v1593 = vrot.slane %v1567, 2
    %v1595 = vmul.f32 %v1581, %v1593
    %v1596 = vadd.f32 %v290, %v1595
    %v1597 = vtanh.pop %v1596
    %v1599 = vrot.slane %v1597, 2
    %v1601 = vsub.f32 %v1445, %v1599
    %v1603 = vrot.slane %v1601, 6
    %v1605 = vmul.f32 %v1591, %v1603
    %v1606 = vadd.f32 %v1597, %v1605
    %vm1607 = vcmask 261126
    %1608 = vst.msk [vmem:[#allocation2 - $0x6] sm:$0xc0] %vm1607, %v1606
    %vm1609 = vcmask 1041408
    %v1610 = vsel %vm1609, %v492, %v651
    %vm1611 = vcmask 1043456
    %v1612 = vsel %vm1611, %v1610, %v812
    %vm1613 = vcmask 1045504
    %v1614 = vsel %vm1613, %v1612, %v973
    %v1615 = vsel %vm1609, %v1125, %v1284
    %v1616 = vsel %vm1611, %v1615, %v1445
    %v1617 = vsel %vm1613, %v1616, %v1606
    %v1618 = vpack.c.bf16 %v1617, %v1614
    %v1619 = vld [vmem:[%s3] sm:$0xf]
    %v1620 = vld [vmem:[%s3 + $0x4] sm:$0xf]
    %v1621 = vld [vmem:[%s3 + $0x8] sm:$0xf]
    %v1622 = vld [vmem:[%s3 + $0xc] sm:$0xf]
    %v1623 = vld [vmem:[%s5] sm:$0x1]
    %v1625 = vlaneseq
    %v1626 = vshrl.u32 %v1625, 7
    %v1627 = vsub.s32 0, %v1626
    %v1628 = vrot.slane %v1623, %v1627
    %v1634 = vunpack.c.l.b16 %v1619
    %v1635 = vunpack.c.l.b16 %v1620
    %v1636 = vunpack.c.l.b16 %v1621
    %v1637 = vunpack.c.l.b16 %v1622
    %v1638 = vpack.c.b16 %v1635, %v1634
    %v1639 = vpack.c.b16 %v1637, %v1636
    %v1643 = vsel %vm321, %v1618, 0
    %1645 = vmatprep.subr.bf16.mxu0 0
    %1646 = vmatpush1.bf16.msra.mxu0 %v1638
    %1647 = vmatprep.subr.bf16.mxu0 0
    %1648 = vmatpush1.bf16.msra.mxu0 %v1639
    %1649 = vmatprep.subr.bf16.mxu0 0
    %1650 = vmatpush1.bf16.msra.mxu0 0
    %1651 = vmatprep.subr.bf16.mxu0 0
    %1652 = vmatpush1.bf16.msra.mxu0 0
    %1653 = vmatprep.subr.bf16.mxu0 0
    %1654 = vmatpush1.bf16.msra.mxu0 0
    %1655 = vmatprep.subr.bf16.mxu0 0
    %1656 = vmatpush1.bf16.msra.mxu0 0
    %1657 = vmatprep.subr.bf16.mxu0 0
    %1658 = vmatpush1.bf16.msra.mxu0 0
    %1659 = vmatprep.subr.bf16.mxu0 0
    %1660 = vmatpush1.bf16.msra.mxu0 0
    %1661 = vmatprep.subr.bf16.mxu0 0
    %1662 = vmatpush1.bf16.msra.mxu0 0
    %1663 = vmatprep.subr.bf16.mxu0 0
    %1664 = vmatpush1.bf16.msra.mxu0 0
    %1665 = vmatprep.subr.bf16.mxu0 0
    %1666 = vmatpush1.bf16.msra.mxu0 0
    %1667 = vmatprep.subr.bf16.mxu0 0
    %1668 = vmatpush1.bf16.msra.mxu0 0
    %1669 = vmatprep.subr.bf16.mxu0 0
    %1670 = vmatpush1.bf16.msra.mxu0 0
    %1671 = vmatprep.subr.bf16.mxu0 0
    %1672 = vmatpush1.bf16.msra.mxu0 0
    %1673 = vmatprep.subr.bf16.mxu0 0
    %1674 = vmatpush1.bf16.msra.mxu0 0
    %1675 = vmatprep.subr.bf16.mxu0 0
    %1676 = vmatpush1.bf16.msra.mxu0 0
    %1677 = vmatprep.mubr.bf16.mxu0 0
    %1678 = vmatmul.mubr.bf16.gmra.mrb[0].mxu0 %v1643
    %v1679 = vpop.f32.mrb[0].mxu0
    %v1680 = vadd.f32 %v1628, %v1679
    %v1681 = vpop.f32.mrb[0].mxu0
    %v1682 = vpop.f32.mrb[0].mxu0
    %v1683 = vadd.f32 %v1628, %v1682
    %v1684 = vpop.f32.mrb[0].mxu0
    %1685 = vdwg.mxu0
    %v1688 = vcombine.high %v1680, %v1680
    %v1690 = vunpack.c.l.s4 1983009808
    %v1691 = vunpack.c.0.s8 %v1690
    %v1692 = vlaneseq
    %v1693 = vshrl.u32 %v1692, 7
    %v1694 = vsub.s32 %v1691, %v1693
    %v1695 = vrot.slane %v1680, %v1694
    %v1697 = vunpack.c.l.s4 1983009808
    %v1698 = vunpack.c.0.s8 %v1697
    %v1699 = vlaneseq
    %v1700 = vshrl.u32 %v1699, 7
    %v1701 = vsub.s32 %v1698, %v1700
    %v1702 = vrot.slane %v1688, %v1701
    %v1703 = vcombine.high %v1695, %v1695
    %v1704 = vcombine.high %v1702, %v1702
    %v1705 = vcombine.high %v1683, %v1683
    %v1707 = vunpack.c.l.s4 1983009808
    %v1708 = vunpack.c.0.s8 %v1707
    %v1709 = vlaneseq
    %v1710 = vshrl.u32 %v1709, 7
    %v1711 = vsub.s32 %v1708, %v1710
    %v1712 = vrot.slane %v1683, %v1711
    %v1714 = vunpack.c.l.s4 1983009808
    %v1715 = vunpack.c.0.s8 %v1714
    %v1716 = vlaneseq
    %v1717 = vshrl.u32 %v1716, 7
    %v1718 = vsub.s32 %v1715, %v1717
    %v1719 = vrot.slane %v1705, %v1718
    %v1720 = vcombine.high %v1712, %v1712
    %v1721 = vcombine.high %v1719, %v1719
    %vm1730 = vcmask 123904
    %1731 = vst.msk [vmem:[#allocation8] sm:$0x3] %vm1730, %v1695
    %1732 = vst.msk [vmem:[#allocation8 + $0x2] sm:$0x3] %vm1730, %v1703
    %1733 = vst.msk [vmem:[#allocation8 + $0x4] sm:$0x3] %vm1730, %v1702
    %1734 = vst.msk [vmem:[#allocation8 + $0x6] sm:$0x3] %vm1730, %v1704
    %1735 = vst.msk [vmem:[#allocation8 + $0x8] sm:$0x3] %vm1730, %v1712
    %1736 = vst.msk [vmem:[#allocation8 + $0xa] sm:$0x3] %vm1730, %v1720
    %1737 = vst.msk [vmem:[#allocation8 + $0xc] sm:$0x3] %vm1730, %v1719
    %1738 = vst.msk [vmem:[#allocation8 + $0xe] sm:$0x3] %vm1730, %v1721
    // Predicated region
    $region38: #{tpu_custom_call.1} parent=1 // pred_check
      _
    $region39: #{tpu_custom_call.1} parent=1 // pred_check_branch
      %1740 = sbr.rel (0) target = $region41
    $region40: #{tpu_custom_call.1} parent=1 // pred_region
      %s1742 = ssub.s32 256, 256
      %1743 = vsyncadd [#allocation5], %s1742
      %s1744 = sshll.u32 [#allocation8], 4
      %s1745 = int_to_ptr.vmem [resolvable:$true] %s1744
      %1750 = dma.vmem_to_hbm [thread:$0]  %s1745, 256, %s6, [#allocation5], 32, 32, 2
    $region41: #{tpu_custom_call.1} parent=1 // pred_fallthru
      _
    // Predicated region
    $region42: #{tpu_custom_call.1} parent=1 // pred_check
      _
    $region43: #{tpu_custom_call.1} parent=1 // pred_check_branch
      %1752 = sbr.rel (0) target = $region45
    $region44: #{tpu_custom_call.1} parent=1 // pred_region
      %1753 = dma.done [#allocation5], 256
    $region45: #{tpu_custom_call.1} parent=1 // pred_fallthru
      _
    %1754 = vsyncpa [#allocation4], 1
    %1755 = vsyncpa [#allocation7], 1
    %1756 = vsyncpa [#allocation5], 1

</llo_original>
